<compile_context>
chip_gen: v5e
topology: v5e:2x2
jax: 0.10.0
libtpu: 0.0.40
codegen_flags: <defaults>
</compile_context>

<pallas_src>
import functools
import math

import jax
import jax.numpy as jnp
from jax.experimental import pallas as pl
from jax.experimental.pallas import tpu as pltpu

_HALF_LOG_2PI = 0.5 * math.log(2.0 * math.pi)


# ----------------------------------------------------------------------------
# Kernel (transposed layout: features on sublanes, batch tile on lanes)
# ----------------------------------------------------------------------------
def _actor_ppo_kernel(sample, bf16_elementwise,
                      state_ref, w1_ref, b1_ref, w2_ref, b2_ref, w3_ref,
                      head_ref, aon_ref, out_ref):
    """Fused MLP + Normal-distribution head for one batch tile.

    head_ref columns: 0 = b3, 1 = std, 2 = 1/(2*std^2), 3 = [C, 0, ...]
      where C = -sum(log std) - A * 0.5 * log(2*pi).
    aon_ref: standard-normal noise (A, TB) when `sample`, else given actions.
    out_ref: (A+1, TB) packed slab; rows 0..A-1 = actions, row A = log_prob.
    """

    def bias_relu(acc_f32, b_ref):
        if bf16_elementwise:
            # bf16 VALU path (v6e / v7x): half the vregs for the elementwise pass.
            return jnp.maximum(acc_f32.astype(jnp.bfloat16)
                               + b_ref[...].astype(jnp.bfloat16), 0)
        return jnp.maximum(acc_f32 + b_ref[...], 0.0).astype(jnp.bfloat16)

    x = state_ref[...]                                               # (S, TB) bf16
    h1 = bias_relu(jnp.dot(w1_ref[...], x,
                           preferred_element_type=jnp.float32), b1_ref)   # (H1,TB)
    h2 = bias_relu(jnp.dot(w2_ref[...], h1,
                           preferred_element_type=jnp.float32), b2_ref)   # (H2,TB)
    mean = jnp.tanh(jnp.dot(w3_ref[...], h2,
                            preferred_element_type=jnp.float32)
                    + head_ref[:, 0:1])                              # (A, TB) f32

    if sample:
        # clamp(Normal(mean, std).sample(), -1, 1); log_prob uses the clamped
        # action, matching the PyTorch forward().
        actions = jnp.clip(mean + head_ref[:, 1:2] * aon_ref[...], -1.0, 1.0)
    else:
        actions = aon_ref[...]

    diff = actions - mean
    logp = (-jnp.sum(diff * diff * head_ref[:, 2:3], axis=0, keepdims=True)
            + head_ref[0:1, 3:4])                                    # (1, TB)

    n_act = actions.shape[0]
    out_ref[0:n_act, :] = actions
    out_ref[n_act:n_act + 1, :] = logp


# ----------------------------------------------------------------------------
# Helpers
# ----------------------------------------------------------------------------
def _has_bf16_valu():
    """True on chips with a bf16 VPU (v6e/v7x); False on v5e."""
    try:
        kind = jax.devices()[0].device_kind.lower()
    except Exception:
        return True
    return not any(tag in kind for tag in ("v5 lite", "v5e", "v5litepod"))


def _round_up(x, m):
    return ((x + m - 1) // m) * m


# ----------------------------------------------------------------------------
# Wrapper
# ----------------------------------------------------------------------------
def actor_ppo_forward(params, state, actions=None, *, noise=None,
                      block_b=1024, bf16_elementwise=None):
    """Pallas implementation of ActorPPO.forward.

    params: w1 (H1,S) bf16, b1 (H1,1) f32, w2 (H2,H1) bf16, b2 (H2,1) f32,
            w3 (A,H2) bf16, b3 (A,1) f32, std (A,1) f32   (PyTorch (out,in) layout)
    state:  (B, S) float
    actions: optional (B, A).  If None, a sample is drawn from the supplied
             standard-normal `noise` (B, A).
    Returns [actions (B,A), log_probs (B,1), entropy (B,A)].
    """
    if bf16_elementwise is None:
        bf16_elementwise = _has_bf16_valu()

    state = jnp.asarray(state)
    B, S = state.shape
    H1 = params["w1"].shape[0]
    H2 = params["w2"].shape[0]
    A = params["w3"].shape[0]

    sample = actions is None
    if sample:
        assert noise is not None, "noise required when actions is None"
        aon_t = jnp.asarray(noise, jnp.float32).reshape(B, A).T         # (A, B)
    else:
        aon_t = jnp.asarray(actions, jnp.float32).reshape(B, -1).T      # (A, B)

    # Lane-dense layout: batch on lanes (last dim), features on sublanes.
    state_t = state.astype(jnp.bfloat16).T                              # (S, B)

    std = jnp.asarray(params["std"], jnp.float32).reshape(A, 1)
    log_std = jnp.log(std)
    inv2var = 1.0 / (2.0 * std * std)
    b3 = jnp.asarray(params["b3"], jnp.float32).reshape(A, 1)
    c_val = -jnp.sum(log_std) - A * _HALF_LOG_2PI                       # scalar
    c_col = jnp.zeros((A, 1), jnp.float32).at[0, 0].set(c_val)
    head = jnp.concatenate([b3, std, inv2var, c_col], axis=1)           # (A, 4)

    # Batch tile: large tiles amortize the ~0.35us per-grid-step pipeline cost.
    # When tiling, keep the tile a multiple of 128 (lane dim) and leave >= 2
    # grid steps so v7x's two TensorCores both get work.
    if B <= block_b:
        TB = B
    else:
        TB = min(_round_up(block_b, 128), _round_up(pl.cdiv(B, 2), 128))
    grid = (pl.cdiv(B, TB),)

    batched = lambda rows: pl.BlockSpec((rows, TB), lambda i: (0, i))   # batch-tiled
    resident = lambda shp: pl.BlockSpec(shp, lambda i: (0, 0))          # VMEM-resident

    kernel = functools.partial(_actor_ppo_kernel, sample, bf16_elementwise)

    packed = pl.pallas_call(
        kernel,
        out_shape=jax.ShapeDtypeStruct((A + 1, B), jnp.float32),
        grid=grid,
        in_specs=[
            batched(S),                 # state^T (bf16)
            resident((H1, S)),          # w1 (bf16)
            resident((H1, 1)),          # b1
            resident((H2, H1)),         # w2 (bf16)
            resident((H2, 1)),          # b2
            resident((A, H2)),          # w3 (bf16)
            resident((A, 4)),           # head: [b3 | std | 1/(2 std^2) | C]
            batched(A),                 # noise or given actions (f32)
        ],
        out_specs=batched(A + 1),       # packed [actions ; logp] slab
        compiler_params=pltpu.CompilerParams(
            dimension_semantics=("parallel",),
            vmem_limit_bytes=48 * 1024 * 1024),
    )(state_t, params["w1"], params["b1"], params["w2"], params["b2"],
      params["w3"], head, aon_t)

    acts = packed[:A, :].T                                              # (B, A)
    logp = packed[A:, :].T                                              # (B, 1)
    # Entropy of Normal(mean, std) is state-independent -> computed outside.
    entropy = jnp.broadcast_to(0.5 + _HALF_LOG_2PI + log_std.reshape(1, A),
                               (B, A))
    return [acts, logp, entropy]


# ----------------------------------------------------------------------------
# Deterministic parameter init (PyTorch nn.Linear layout: (out, in))
# ----------------------------------------------------------------------------
def init_params(key, state_size, action_size, fc1_units=512, fc2_units=256):
    ks = jax.random.split(key, 6)

    def lin(kw, kb, fan_in, fan_out):
        lim = 1.0 / math.sqrt(fan_in)
        w = jax.random.uniform(kw, (fan_out, fan_in), jnp.float32, -lim, lim)
        b = jax.random.uniform(kb, (fan_out, 1), jnp.float32, -lim, lim)
        return w.astype(jnp.bfloat16), b    # bf16 weights halve resident VMEM/HBM

    w1, b1 = lin(ks[0], ks[1], state_size, fc1_units)
    w2, b2 = lin(ks[2], ks[3], fc1_units, fc2_units)
    w3, b3 = lin(ks[4], ks[5], fc2_units, action_size)
    std = jnp.ones((action_size, 1), jnp.float32)   # nn.Parameter(torch.ones(A))
    return dict(w1=w1, b1=b1, w2=w2, b2=b2, w3=w3, b3=b3, std=std)


# ----------------------------------------------------------------------------
# Pure-JAX reference (mirrors the kernel's dtype choices)
# ----------------------------------------------------------------------------
def reference_forward(params, state, actions=None, noise=None,
                      bf16_elementwise=True):
    bf16 = jnp.bfloat16
    state = jnp.asarray(state, jnp.float32)
    B = state.shape[0]
    A = params["w3"].shape[0]

    def layer(x_bf16, w, b):
        acc = jnp.dot(x_bf16, w.T, preferred_element_type=jnp.float32)
        if bf16_elementwise:
            return jnp.maximum(acc.astype(bf16) + b.reshape(1, -1).astype(bf16), 0)
        return jnp.maximum(acc + b.reshape(1, -1), 0.0).astype(bf16)

    h1 = layer(state.astype(bf16), params["w1"], params["b1"])
    h2 = layer(h1, params["w2"], params["b2"])
    mean = jnp.tanh(jnp.dot(h2, params["w3"].T,
                            preferred_element_type=jnp.float32)
                    + params["b3"].reshape(1, -1))
    std = jnp.asarray(params["std"], jnp.float32).reshape(1, A)
    if actions is None:
        actions = jnp.clip(mean + std * jnp.asarray(noise, jnp.float32),
                           -1.0, 1.0)
    else:
        actions = jnp.asarray(actions, jnp.float32).reshape(B, -1)
    inv2var = 1.0 / (2.0 * std * std)
    c = -jnp.sum(jnp.log(std)) - A * _HALF_LOG_2PI
    logp = -jnp.sum((actions - mean) ** 2 * inv2var, axis=-1, keepdims=True) + c
    ent = jnp.broadcast_to(0.5 + _HALF_LOG_2PI + jnp.log(std), mean.shape)
    return [actions, logp, ent]


# ----------------------------------------------------------------------------
if __name__ == "__main__":
    key = jax.random.PRNGKey(0)
    k_params, k_state, k_noise, k_act, k_state2, k_noise2 = jax.random.split(key, 6)

    S, A = 24, 4                # state_size, action_size
    FC1, FC2 = 512, 256         # module defaults
    params = init_params(k_params, S, A, FC1, FC2)
    bf16_ew = _has_bf16_valu()

    def check(got, ref):
        assert jnp.allclose(got, ref, rtol=2e-3, atol=2e-3), "mismatch vs reference"

    # --- Case 1: small batch, single grid step (sample & given-action paths) --
    B = 8
    state = jax.random.normal(k_state, (B, S), jnp.float32)
    noise = jax.random.normal(k_noise, (B, A), jnp.float32)
    ext_actions = jax.random.uniform(k_act, (B, A), jnp.float32, -1.0, 1.0)

    out_s = actor_ppo_forward(params, state, noise=noise,
                              bf16_elementwise=bf16_ew)
    out_g = actor_ppo_forward(params, state, actions=ext_actions,
                              bf16_elementwise=bf16_ew)
    jax.block_until_ready((out_s, out_g))

    ref_s = reference_forward(params, state, None, noise,
                              bf16_elementwise=bf16_ew)
    ref_g = reference_forward(params, state, ext_actions,
                              bf16_elementwise=bf16_ew)
    for got, ref in zip(out_s + out_g, ref_s + ref_g):
        check(got, ref)

    # --- Case 2: multi-step grid with a partial last tile (B=300, TB=128) ----
    B2 = 300
    state2 = jax.random.normal(k_state2, (B2, S), jnp.float32)
    noise2 = jax.random.normal(k_noise2, (B2, A), jnp.float32)

    out2 = actor_ppo_forward(params, state2, noise=noise2, block_b=128,
                             bf16_elementwise=bf16_ew)
    jax.block_until_ready(out2)

    ref2 = reference_forward(params, state2, None, noise2,
                             bf16_elementwise=bf16_ew)
    for got, ref in zip(out2, ref2):
        check(got, ref)

    print("KERNEL_OK")
</pallas_src>

<mosaic_0001>
module attributes {stable_mosaic.version = 11 : i64} {
  func.func @_actor_ppo_kernel(%arg0: i32, %arg1: memref<24x8xbf16, #tpu.memory_space<vmem>>, %arg2: memref<512x24xbf16, #tpu.memory_space<vmem>>, %arg3: memref<512x1xf32, #tpu.memory_space<vmem>>, %arg4: memref<256x512xbf16, #tpu.memory_space<vmem>>, %arg5: memref<256x1xf32, #tpu.memory_space<vmem>>, %arg6: memref<4x256xbf16, #tpu.memory_space<vmem>>, %arg7: memref<4x4xf32, #tpu.memory_space<vmem>>, %arg8: memref<4x8xf32, #tpu.memory_space<vmem>>, %arg9: memref<5x8xf32, #tpu.memory_space<vmem>>) attributes {dimension_semantics = [#tpu.dimension_semantics<parallel>], iteration_bounds = array<i64: 1>, scalar_prefetch = 0 : i64, scratch_operands = 0 : i64, tpu.core_type = #tpu.core_type<tc>, window_params = [{transform_indices = @transform_0, window_bounds = array<i64: 24, 8>}, {pipeline_mode = #tpu.pipeline_mode<synchronous>, transform_indices = @transform_1, window_bounds = array<i64: 512, 24>}, {pipeline_mode = #tpu.pipeline_mode<synchronous>, transform_indices = @transform_2, window_bounds = array<i64: 512, 1>}, {pipeline_mode = #tpu.pipeline_mode<synchronous>, transform_indices = @transform_3, window_bounds = array<i64: 256, 512>}, {pipeline_mode = #tpu.pipeline_mode<synchronous>, transform_indices = @transform_4, window_bounds = array<i64: 256, 1>}, {pipeline_mode = #tpu.pipeline_mode<synchronous>, transform_indices = @transform_5, window_bounds = array<i64: 4, 256>}, {pipeline_mode = #tpu.pipeline_mode<synchronous>, transform_indices = @transform_6, window_bounds = array<i64: 4, 4>}, {transform_indices = @transform_7, window_bounds = array<i64: 4, 8>}, {transform_indices = @transform_8, window_bounds = array<i64: 5, 8>}]} {
    %c0 = arith.constant 0 : index
    %c0_0 = arith.constant 0 : index
    %0 = vector.load %arg1[%c0, %c0_0] : memref<24x8xbf16, #tpu.memory_space<vmem>>, vector<24x8xbf16>
    %c0_1 = arith.constant 0 : index
    %c0_2 = arith.constant 0 : index
    %1 = vector.load %arg2[%c0_1, %c0_2] : memref<512x24xbf16, #tpu.memory_space<vmem>>, vector<512x24xbf16>
    %cst = arith.constant dense<0.000000e+00> : vector<512x8xf32>
    %2 = tpu.matmul %1, %0, %cst {dimension_numbers = #tpu.dot_dimension_numbers<[1], [0], [0], [1], [0, 0, 1, 1], [], []>} : vector<512x24xbf16>, vector<24x8xbf16>, vector<512x8xf32> -> vector<512x8xf32>
    %3 = arith.truncf %2 : vector<512x8xf32> to vector<512x8xbf16>
    %c0_3 = arith.constant 0 : index
    %c0_4 = arith.constant 0 : index
    %4 = vector.load %arg3[%c0_3, %c0_4] : memref<512x1xf32, #tpu.memory_space<vmem>>, vector<512x1xf32>
    %5 = arith.truncf %4 : vector<512x1xf32> to vector<512x1xbf16>
    %6 = vector.broadcast %5 : vector<512x1xbf16> to vector<512x8xbf16>
    %7 = arith.addf %3, %6 : vector<512x8xbf16>
    %cst_5 = arith.constant 0.000000e+00 : bf16
    %8 = vector.broadcast %cst_5 : bf16 to vector<512x8xbf16>
    %9 = arith.maximumf %7, %8 : vector<512x8xbf16>
    %c0_6 = arith.constant 0 : index
    %c0_7 = arith.constant 0 : index
    %10 = vector.load %arg4[%c0_6, %c0_7] : memref<256x512xbf16, #tpu.memory_space<vmem>>, vector<256x512xbf16>
    %cst_8 = arith.constant dense<0.000000e+00> : vector<256x8xf32>
    %11 = tpu.matmul %10, %9, %cst_8 {dimension_numbers = #tpu.dot_dimension_numbers<[1], [0], [0], [1], [0, 0, 1, 1], [], []>} : vector<256x512xbf16>, vector<512x8xbf16>, vector<256x8xf32> -> vector<256x8xf32>
    %12 = arith.truncf %11 : vector<256x8xf32> to vector<256x8xbf16>
    %c0_9 = arith.constant 0 : index
    %c0_10 = arith.constant 0 : index
    %13 = vector.load %arg5[%c0_9, %c0_10] : memref<256x1xf32, #tpu.memory_space<vmem>>, vector<256x1xf32>
    %14 = arith.truncf %13 : vector<256x1xf32> to vector<256x1xbf16>
    %15 = vector.broadcast %14 : vector<256x1xbf16> to vector<256x8xbf16>
    %16 = arith.addf %12, %15 : vector<256x8xbf16>
    %cst_11 = arith.constant 0.000000e+00 : bf16
    %17 = vector.broadcast %cst_11 : bf16 to vector<256x8xbf16>
    %18 = arith.maximumf %16, %17 : vector<256x8xbf16>
    %c0_12 = arith.constant 0 : index
    %c0_13 = arith.constant 0 : index
    %19 = vector.load %arg6[%c0_12, %c0_13] : memref<4x256xbf16, #tpu.memory_space<vmem>>, vector<4x256xbf16>
    %cst_14 = arith.constant dense<0.000000e+00> : vector<4x8xf32>
    %20 = tpu.matmul %19, %18, %cst_14 {dimension_numbers = #tpu.dot_dimension_numbers<[1], [0], [0], [1], [0, 0, 1, 1], [], []>} : vector<4x256xbf16>, vector<256x8xbf16>, vector<4x8xf32> -> vector<4x8xf32>
    %c0_15 = arith.constant 0 : index
    %c0_16 = arith.constant 0 : index
    %21 = vector.load %arg7[%c0_15, %c0_16] : memref<4x4xf32, #tpu.memory_space<vmem>>, vector<4x1xf32>
    %22 = vector.broadcast %21 : vector<4x1xf32> to vector<4x8xf32>
    %23 = arith.addf %20, %22 : vector<4x8xf32>
    %24 = math.tanh %23 : vector<4x8xf32>
    %c0_17 = arith.constant 0 : index
    %c1 = arith.constant 1 : index
    %25 = vector.load %arg7[%c0_17, %c1] : memref<4x4xf32, #tpu.memory_space<vmem>>, vector<4x1xf32>
    %c0_18 = arith.constant 0 : index
    %c0_19 = arith.constant 0 : index
    %26 = vector.load %arg8[%c0_18, %c0_19] : memref<4x8xf32, #tpu.memory_space<vmem>>, vector<4x8xf32>
    %27 = vector.broadcast %25 : vector<4x1xf32> to vector<4x8xf32>
    %28 = arith.mulf %27, %26 : vector<4x8xf32>
    %29 = arith.addf %24, %28 : vector<4x8xf32>
    %cst_20 = arith.constant -1.000000e+00 : f32
    %cst_21 = arith.constant 1.000000e+00 : f32
    %30 = vector.broadcast %cst_20 : f32 to vector<4x8xf32>
    %31 = arith.maximumf %30, %29 : vector<4x8xf32>
    %32 = vector.broadcast %cst_21 : f32 to vector<4x8xf32>
    %33 = arith.minimumf %32, %31 : vector<4x8xf32>
    %34 = arith.subf %33, %24 : vector<4x8xf32>
    %35 = arith.mulf %34, %34 : vector<4x8xf32>
    %c0_22 = arith.constant 0 : index
    %c2 = arith.constant 2 : index
    %36 = vector.load %arg7[%c0_22, %c2] : memref<4x4xf32, #tpu.memory_space<vmem>>, vector<4x1xf32>
    %37 = vector.broadcast %36 : vector<4x1xf32> to vector<4x8xf32>
    %38 = arith.mulf %35, %37 : vector<4x8xf32>
    %cst_23 = arith.constant dense<0.000000e+00> : vector<8xf32>
    %39 = vector.multi_reduction <add>, %38, %cst_23 [0] : vector<4x8xf32> to vector<8xf32>
    %40 = vector.shape_cast %39 : vector<8xf32> to vector<1x8xf32>
    %cst_24 = arith.constant 0.000000e+00 : f32
    %41 = vector.broadcast %cst_24 : f32 to vector<1x8xf32>
    %42 = arith.subf %41, %40 : vector<1x8xf32>
    %c0_25 = arith.constant 0 : index
    %c3 = arith.constant 3 : index
    %43 = vector.load %arg7[%c0_25, %c3] : memref<4x4xf32, #tpu.memory_space<vmem>>, vector<1x1xf32>
    %44 = vector.broadcast %43 : vector<1x1xf32> to vector<1x8xf32>
    %45 = arith.addf %42, %44 : vector<1x8xf32>
    %c0_26 = arith.constant 0 : index
    %c0_27 = arith.constant 0 : index
    %46 = vector.load %arg9[%c0_26, %c0_27] : memref<5x8xf32, #tpu.memory_space<vmem>>, vector<4x8xf32>
    tpu.vector_store %arg9[%c0_26, %c0_27], %33 {strides = array<i32>} : memref<5x8xf32, #tpu.memory_space<vmem>>, vector<4x8xf32>,
    %c4 = arith.constant 4 : index
    %c0_28 = arith.constant 0 : index
    %47 = vector.load %arg9[%c4, %c0_28] : memref<5x8xf32, #tpu.memory_space<vmem>>, vector<1x8xf32>
    tpu.vector_store %arg9[%c4, %c0_28], %45 {strides = array<i32>} : memref<5x8xf32, #tpu.memory_space<vmem>>, vector<1x8xf32>,
    return
  }
  func.func @transform_0(%arg0: i32) -> (i32, i32) {
    %c0_i32 = arith.constant 0 : i32
    %c0_i32_0 = arith.constant 0 : i32
    return %c0_i32, %arg0 : i32, i32
  }
  func.func @transform_1(%arg0: i32) -> (i32, i32) {
    %c0_i32 = arith.constant 0 : i32
    %c0_i32_0 = arith.constant 0 : i32
    %c0_i32_1 = arith.constant 0 : i32
    return %c0_i32, %c0_i32_0 : i32, i32
  }
  func.func @transform_2(%arg0: i32) -> (i32, i32) {
    %c0_i32 = arith.constant 0 : i32
    %c0_i32_0 = arith.constant 0 : i32
    %c0_i32_1 = arith.constant 0 : i32
    return %c0_i32, %c0_i32_0 : i32, i32
  }
  func.func @transform_3(%arg0: i32) -> (i32, i32) {
    %c0_i32 = arith.constant 0 : i32
    %c0_i32_0 = arith.constant 0 : i32
    %c0_i32_1 = arith.constant 0 : i32
    return %c0_i32, %c0_i32_0 : i32, i32
  }
  func.func @transform_4(%arg0: i32) -> (i32, i32) {
    %c0_i32 = arith.constant 0 : i32
    %c0_i32_0 = arith.constant 0 : i32
    %c0_i32_1 = arith.constant 0 : i32
    return %c0_i32, %c0_i32_0 : i32, i32
  }
  func.func @transform_5(%arg0: i32) -> (i32, i32) {
    %c0_i32 = arith.constant 0 : i32
    %c0_i32_0 = arith.constant 0 : i32
    %c0_i32_1 = arith.constant 0 : i32
    return %c0_i32, %c0_i32_0 : i32, i32
  }
  func.func @transform_6(%arg0: i32) -> (i32, i32) {
    %c0_i32 = arith.constant 0 : i32
    %c0_i32_0 = arith.constant 0 : i32
    %c0_i32_1 = arith.constant 0 : i32
    return %c0_i32, %c0_i32_0 : i32, i32
  }
  func.func @transform_7(%arg0: i32) -> (i32, i32) {
    %c0_i32 = arith.constant 0 : i32
    %c0_i32_0 = arith.constant 0 : i32
    return %c0_i32, %arg0 : i32, i32
  }
  func.func @transform_8(%arg0: i32) -> (i32, i32) {
    %c0_i32 = arith.constant 0 : i32
    %c0_i32_0 = arith.constant 0 : i32
    return %c0_i32, %arg0 : i32, i32
  }
}

</mosaic_0001>

<llo_original>
// kernel: tpu_custom_call.1
$region0: #{tpu_custom_call.1}
  #allocation0 [shape = 'u32[]', space=smem, size = 0x4, offset = 0x4, fixed_abs, tag = 'smem constant byte address 0x4 - core index']
  #allocation1 [shape = 'u32[72,128]{1,0:T(1,128)}', space=vmem, size = 0x9000, scoped, tag = 'internal scratch']
  %s0 = inlined_call_operand.vmem [shape: bf16[24,8], index: 0, kind: input, shape index: {}]
  %s1 = inlined_call_operand.vmem [shape: bf16[512,24], index: 1, kind: input, shape index: {}]
  %s2 = inlined_call_operand.vmem [shape: f32[512,1], index: 2, kind: input, shape index: {}]
  %s3 = inlined_call_operand.vmem [shape: bf16[256,512], index: 3, kind: input, shape index: {}]
  %s4 = inlined_call_operand.vmem [shape: f32[256,1], index: 4, kind: input, shape index: {}]
  %s5 = inlined_call_operand.vmem [shape: bf16[4,256], index: 5, kind: input, shape index: {}]
  %s6 = inlined_call_operand.vmem [shape: f32[4,4], index: 6, kind: input, shape index: {}]
  %s7 = inlined_call_operand.vmem [shape: f32[4,8], index: 7, kind: input, shape index: {}]
  %s8 = inlined_call_operand.hbm [shape: f32[5,8], index: 8, kind: output, shape index: {}]
  %s9 = sld [smem:[#allocation0]]
  $region42: #{tpu_custom_call.1} parent=0
    _
  %s11 = ssub.s32 1, %s9
  %s12 = scalar_select 0, %s11, %s9
  $region1: #{tpu_custom_call.1} parent=0
    #allocation2 [shape = 'u8[4096]{0}', space=vmem, size = 0x1000, scoped, tag = 'output window, operand 0, single buffered']
    #allocation3 [shape = 's32[1]{0}', space=sflag, size = 0x4, scoped, tag = 'scoped memory for tpu_custom_call.1']
    %13 = vsyncpa [#allocation3], 0
    // Predicated region
    $region2: #{tpu_custom_call.1} parent=1 // pred_check
      _
    $region3: #{tpu_custom_call.1} parent=1 // pred_check_branch
      %15 = sbr.rel (0) target = $region5
    $region4: #{tpu_custom_call.1} parent=1 // pred_region
      _
    $region5: #{tpu_custom_call.1} parent=1 // pred_fallthru
      _
    // Predicated region
    $region6: #{tpu_custom_call.1} parent=1 // pred_check
      _
    $region7: #{tpu_custom_call.1} parent=1 // pred_check_branch
      %17 = sbr.rel (0) target = $region9
    $region8: #{tpu_custom_call.1} parent=1 // pred_region
      _
    $region9: #{tpu_custom_call.1} parent=1 // pred_fallthru
      _
    // Predicated region
    $region10: #{tpu_custom_call.1} parent=1 // pred_check
      _
    $region11: #{tpu_custom_call.1} parent=1 // pred_check_branch
      %19 = sbr.rel (0) target = $region13
    $region12: #{tpu_custom_call.1} parent=1 // pred_region
      _
    $region13: #{tpu_custom_call.1} parent=1 // pred_fallthru
      _
    // Predicated region
    $region14: #{tpu_custom_call.1} parent=1 // pred_check
      _
    $region15: #{tpu_custom_call.1} parent=1 // pred_check_branch
      %21 = sbr.rel (0) target = $region17
    $region16: #{tpu_custom_call.1} parent=1 // pred_region
      _
    $region17: #{tpu_custom_call.1} parent=1 // pred_fallthru
      _
    // Predicated region
    $region18: #{tpu_custom_call.1} parent=1 // pred_check
      _
    $region19: #{tpu_custom_call.1} parent=1 // pred_check_branch
      %23 = sbr.rel (0) target = $region21
    $region20: #{tpu_custom_call.1} parent=1 // pred_region
      _
    $region21: #{tpu_custom_call.1} parent=1 // pred_fallthru
      _
    // Predicated region
    $region22: #{tpu_custom_call.1} parent=1 // pred_check
      _
    $region23: #{tpu_custom_call.1} parent=1 // pred_check_branch
      %25 = sbr.rel (0) target = $region25
    $region24: #{tpu_custom_call.1} parent=1 // pred_region
      _
    $region25: #{tpu_custom_call.1} parent=1 // pred_fallthru
      _
    // Predicated region
    $region26: #{tpu_custom_call.1} parent=1 // pred_check
      _
    $region27: #{tpu_custom_call.1} parent=1 // pred_check_branch
      %27 = sbr.rel (0) target = $region29
    $region28: #{tpu_custom_call.1} parent=1 // pred_region
      _
    $region29: #{tpu_custom_call.1} parent=1 // pred_fallthru
      _
    // Predicated region
    $region30: #{tpu_custom_call.1} parent=1 // pred_check
      _
    $region31: #{tpu_custom_call.1} parent=1 // pred_check_branch
      %29 = sbr.rel (0) target = $region33
    $region32: #{tpu_custom_call.1} parent=1 // pred_region
      _
    $region33: #{tpu_custom_call.1} parent=1 // pred_fallthru
      _
    %v31 = vld [vmem:[%s0] sm:$0xf]
    %v32 = vld [vmem:[%s0 + $0x4] sm:$0xf]
    %v33 = vld [vmem:[%s0 + $0x8] sm:$0xf]
    %v34 = vld [vmem:[%s1] sm:$0xf]
    %v35 = vld [vmem:[%s1 + $0x4] sm:$0xf]
    %v36 = vld [vmem:[%s1 + $0x8] sm:$0xf]
    %v37 = vld [vmem:[%s1 + $0xc] sm:$0xf]
    %v38 = vld [vmem:[%s1 + $0x10] sm:$0xf]
    %v39 = vld [vmem:[%s1 + $0x14] sm:$0xf]
    %v40 = vld [vmem:[%s1 + $0x18] sm:$0xf]
    %v41 = vld [vmem:[%s1 + $0x1c] sm:$0xf]
    %v42 = vld [vmem:[%s1 + $0x20] sm:$0xf]
    %v43 = vld [vmem:[%s1 + $0x24] sm:$0xf]
    %v44 = vld [vmem:[%s1 + $0x28] sm:$0xf]
    %v45 = vld [vmem:[%s1 + $0x2c] sm:$0xf]
    %v46 = vld [vmem:[%s1 + $0x30] sm:$0xf]
    %v47 = vld [vmem:[%s1 + $0x34] sm:$0xf]
    %v48 = vld [vmem:[%s1 + $0x38] sm:$0xf]
    %v49 = vld [vmem:[%s1 + $0x3c] sm:$0xf]
    %v50 = vld [vmem:[%s1 + $0x40] sm:$0xf]
    %v51 = vld [vmem:[%s1 + $0x44] sm:$0xf]
    %v52 = vld [vmem:[%s1 + $0x48] sm:$0xf]
    %v53 = vld [vmem:[%s1 + $0x4c] sm:$0xf]
    %v54 = vld [vmem:[%s1 + $0x50] sm:$0xf]
    %v55 = vld [vmem:[%s1 + $0x54] sm:$0xf]
    %v56 = vld [vmem:[%s1 + $0x58] sm:$0xf]
    %v57 = vld [vmem:[%s1 + $0x5c] sm:$0xf]
    %v58 = vld [vmem:[%s1 + $0x60] sm:$0xf]
    %v59 = vld [vmem:[%s1 + $0x64] sm:$0xf]
    %v60 = vld [vmem:[%s1 + $0x68] sm:$0xf]
    %v61 = vld [vmem:[%s1 + $0x6c] sm:$0xf]
    %v62 = vld [vmem:[%s1 + $0x70] sm:$0xf]
    %v63 = vld [vmem:[%s1 + $0x74] sm:$0xf]
    %v64 = vld [vmem:[%s1 + $0x78] sm:$0xf]
    %v65 = vld [vmem:[%s1 + $0x7c] sm:$0xf]
    %v66 = vld [vmem:[%s1 + $0x80] sm:$0xf]
    %v67 = vld [vmem:[%s1 + $0x84] sm:$0xf]
    %v68 = vld [vmem:[%s1 + $0x88] sm:$0xf]
    %v69 = vld [vmem:[%s1 + $0x8c] sm:$0xf]
    %v70 = vld [vmem:[%s1 + $0x90] sm:$0xf]
    %v71 = vld [vmem:[%s1 + $0x94] sm:$0xf]
    %v72 = vld [vmem:[%s1 + $0x98] sm:$0xf]
    %v73 = vld [vmem:[%s1 + $0x9c] sm:$0xf]
    %v74 = vld [vmem:[%s1 + $0xa0] sm:$0xf]
    %v75 = vld [vmem:[%s1 + $0xa4] sm:$0xf]
    %v76 = vld [vmem:[%s1 + $0xa8] sm:$0xf]
    %v77 = vld [vmem:[%s1 + $0xac] sm:$0xf]
    %v78 = vld [vmem:[%s1 + $0xb0] sm:$0xf]
    %v79 = vld [vmem:[%s1 + $0xb4] sm:$0xf]
    %v80 = vld [vmem:[%s1 + $0xb8] sm:$0xf]
    %v81 = vld [vmem:[%s1 + $0xbc] sm:$0xf]
    %v82 = vld [vmem:[%s1 + $0xc0] sm:$0xf]
    %v83 = vld [vmem:[%s1 + $0xc4] sm:$0xf]
    %v84 = vld [vmem:[%s1 + $0xc8] sm:$0xf]
    %v85 = vld [vmem:[%s1 + $0xcc] sm:$0xf]
    %v86 = vld [vmem:[%s1 + $0xd0] sm:$0xf]
    %v87 = vld [vmem:[%s1 + $0xd4] sm:$0xf]
    %v88 = vld [vmem:[%s1 + $0xd8] sm:$0xf]
    %v89 = vld [vmem:[%s1 + $0xdc] sm:$0xf]
    %v90 = vld [vmem:[%s1 + $0xe0] sm:$0xf]
    %v91 = vld [vmem:[%s1 + $0xe4] sm:$0xf]
    %v92 = vld [vmem:[%s1 + $0xe8] sm:$0xf]
    %v93 = vld [vmem:[%s1 + $0xec] sm:$0xf]
    %v94 = vld [vmem:[%s1 + $0xf0] sm:$0xf]
    %v95 = vld [vmem:[%s1 + $0xf4] sm:$0xf]
    %v96 = vld [vmem:[%s1 + $0xf8] sm:$0xf]
    %v97 = vld [vmem:[%s1 + $0xfc] sm:$0xf]
    %v162 = vunpack.c.l.b16 %v34
    %v163 = vunpack.c.l.b16 %v35
    %v164 = vunpack.c.l.b16 %v36
    %v165 = vunpack.c.l.b16 %v37
    %v166 = vunpack.c.l.b16 %v38
    %v167 = vunpack.c.l.b16 %v39
    %v168 = vunpack.c.l.b16 %v40
    %v169 = vunpack.c.l.b16 %v41
    %v170 = vunpack.c.l.b16 %v42
    %v171 = vunpack.c.l.b16 %v43
    %v172 = vunpack.c.l.b16 %v44
    %v173 = vunpack.c.l.b16 %v45
    %v174 = vunpack.c.l.b16 %v46
    %v175 = vunpack.c.l.b16 %v47
    %v176 = vunpack.c.l.b16 %v48
    %v177 = vunpack.c.l.b16 %v49
    %v178 = vunpack.c.l.b16 %v50
    %v179 = vunpack.c.l.b16 %v51
    %v180 = vunpack.c.l.b16 %v52
    %v181 = vunpack.c.l.b16 %v53
    %v182 = vunpack.c.l.b16 %v54
    %v183 = vunpack.c.l.b16 %v55
    %v184 = vunpack.c.l.b16 %v56
    %v185 = vunpack.c.l.b16 %v57
    %v186 = vunpack.c.l.b16 %v58
    %v187 = vunpack.c.l.b16 %v59
    %v188 = vunpack.c.l.b16 %v60
    %v189 = vunpack.c.l.b16 %v61
    %v190 = vunpack.c.l.b16 %v62
    %v191 = vunpack.c.l.b16 %v63
    %v192 = vunpack.c.l.b16 %v64
    %v193 = vunpack.c.l.b16 %v65
    %v194 = vunpack.c.l.b16 %v66
    %v195 = vunpack.c.l.b16 %v67
    %v196 = vunpack.c.l.b16 %v68
    %v197 = vunpack.c.l.b16 %v69
    %v198 = vunpack.c.l.b16 %v70
    %v199 = vunpack.c.l.b16 %v71
    %v200 = vunpack.c.l.b16 %v72
    %v201 = vunpack.c.l.b16 %v73
    %v202 = vunpack.c.l.b16 %v74
    %v203 = vunpack.c.l.b16 %v75
    %v204 = vunpack.c.l.b16 %v76
    %v205 = vunpack.c.l.b16 %v77
    %v206 = vunpack.c.l.b16 %v78
    %v207 = vunpack.c.l.b16 %v79
    %v208 = vunpack.c.l.b16 %v80
    %v209 = vunpack.c.l.b16 %v81
    %v210 = vunpack.c.l.b16 %v82
    %v211 = vunpack.c.l.b16 %v83
    %v212 = vunpack.c.l.b16 %v84
    %v213 = vunpack.c.l.b16 %v85
    %v214 = vunpack.c.l.b16 %v86
    %v215 = vunpack.c.l.b16 %v87
    %v216 = vunpack.c.l.b16 %v88
    %v217 = vunpack.c.l.b16 %v89
    %v218 = vunpack.c.l.b16 %v90
    %v219 = vunpack.c.l.b16 %v91
    %v220 = vunpack.c.l.b16 %v92
    %v221 = vunpack.c.l.b16 %v93
    %v222 = vunpack.c.l.b16 %v94
    %v223 = vunpack.c.l.b16 %v95
    %v224 = vunpack.c.l.b16 %v96
    %v225 = vunpack.c.l.b16 %v97
    %v226 = vpack.c.b16 %v163, %v162
    %v227 = vpack.c.b16 %v165, %v164
    %v228 = vpack.c.b16 %v167, %v166
    %v229 = vpack.c.b16 %v169, %v168
    %v230 = vpack.c.b16 %v171, %v170
    %v231 = vpack.c.b16 %v173, %v172
    %v232 = vpack.c.b16 %v175, %v174
    %v233 = vpack.c.b16 %v177, %v176
    %v234 = vpack.c.b16 %v179, %v178
    %v235 = vpack.c.b16 %v181, %v180
    %v236 = vpack.c.b16 %v183, %v182
    %v237 = vpack.c.b16 %v185, %v184
    %v238 = vpack.c.b16 %v187, %v186
    %v239 = vpack.c.b16 %v189, %v188
    %v240 = vpack.c.b16 %v191, %v190
    %v241 = vpack.c.b16 %v193, %v192
    %v242 = vpack.c.b16 %v195, %v194
    %v243 = vpack.c.b16 %v197, %v196
    %v244 = vpack.c.b16 %v199, %v198
    %v245 = vpack.c.b16 %v201, %v200
    %v246 = vpack.c.b16 %v203, %v202
    %v247 = vpack.c.b16 %v205, %v204
    %v248 = vpack.c.b16 %v207, %v206
    %v249 = vpack.c.b16 %v209, %v208
    %v250 = vpack.c.b16 %v211, %v210
    %v251 = vpack.c.b16 %v213, %v212
    %v252 = vpack.c.b16 %v215, %v214
    %v253 = vpack.c.b16 %v217, %v216
    %v254 = vpack.c.b16 %v219, %v218
    %v255 = vpack.c.b16 %v221, %v220
    %v256 = vpack.c.b16 %v223, %v222
    %v257 = vpack.c.b16 %v225, %v224
    %v261 = vunpack.c.l.b16 %v31
    %v262 = vunpack.c.l.b16 %v32
    %v263 = vunpack.c.l.b16 %v33
    %v264 = vpack.c.b16 %v262, %v261
    %v265 = vpack.c.b16 %v263, %v263
    %vm267 = vcmask 195584
    %v269 = vsel %vm267, %v226, 0
    %v272 = vsel %vm267, %v227, 0
    %v275 = vsel %vm267, %v228, 0
    %v278 = vsel %vm267, %v229, 0
    %v281 = vsel %vm267, %v230, 0
    %v284 = vsel %vm267, %v231, 0
    %v287 = vsel %vm267, %v232, 0
    %v290 = vsel %vm267, %v233, 0
    %v293 = vsel %vm267, %v234, 0
    %v296 = vsel %vm267, %v235, 0
    %v299 = vsel %vm267, %v236, 0
    %v302 = vsel %vm267, %v237, 0
    %v305 = vsel %vm267, %v238, 0
    %v308 = vsel %vm267, %v239, 0
    %v311 = vsel %vm267, %v240, 0
    %v314 = vsel %vm267, %v241, 0
    %v317 = vsel %vm267, %v242, 0
    %v320 = vsel %vm267, %v243, 0
    %v323 = vsel %vm267, %v244, 0
    %v326 = vsel %vm267, %v245, 0
    %v329 = vsel %vm267, %v246, 0
    %v332 = vsel %vm267, %v247, 0
    %v335 = vsel %vm267, %v248, 0
    %v338 = vsel %vm267, %v249, 0
    %v341 = vsel %vm267, %v250, 0
    %v344 = vsel %vm267, %v251, 0
    %v347 = vsel %vm267, %v252, 0
    %v350 = vsel %vm267, %v253, 0
    %v353 = vsel %vm267, %v254, 0
    %v356 = vsel %vm267, %v255, 0
    %v359 = vsel %vm267, %v256, 0
    %v362 = vsel %vm267, %v257, 0
    %vm364 = vcmask 1043456
    %v366 = vsel %vm364, %v265, 0
    %368 = vmatpush.bf16.msra.mxu0 0
    %369 = vmatpush.bf16.msra.mxu0 0
    %370 = vmatpush.bf16.msra.mxu0 0
    %371 = vmatpush.bf16.msra.mxu0 0
    %372 = vmatpush.bf16.msra.mxu0 0
    %373 = vmatpush.bf16.msra.mxu0 0
    %374 = vmatpush.bf16.msra.mxu0 %v366
    %375 = vmatpush.bf16.msra.mxu0 %v264
    %376 = vmatmul.bf16.gmra.mxu0 %v269
    %v377 = vpop.f32.mrf.mxu0
    %v378 = vadd.f32 0.0, %v377
    %v379 = vpop.f32.mrf.mxu0
    %v380 = vadd.f32 0.0, %v379
    %381 = vmatmul.bf16.gmra.mxu0 %v272
    %v382 = vpop.f32.mrf.mxu0
    %v383 = vadd.f32 0.0, %v382
    %v384 = vpop.f32.mrf.mxu0
    %v385 = vadd.f32 0.0, %v384
    %386 = vmatmul.bf16.gmra.mxu0 %v275
    %v387 = vpop.f32.mrf.mxu0
    %v388 = vadd.f32 0.0, %v387
    %v389 = vpop.f32.mrf.mxu0
    %v390 = vadd.f32 0.0, %v389
    %391 = vmatmul.bf16.gmra.mxu0 %v278
    %v392 = vpop.f32.mrf.mxu0
    %v393 = vadd.f32 0.0, %v392
    %v394 = vpop.f32.mrf.mxu0
    %v395 = vadd.f32 0.0, %v394
    %396 = vmatmul.bf16.gmra.mxu0 %v281
    %v397 = vpop.f32.mrf.mxu0
    %v398 = vadd.f32 0.0, %v397
    %v399 = vpop.f32.mrf.mxu0
    %v400 = vadd.f32 0.0, %v399
    %401 = vmatmul.bf16.gmra.mxu0 %v284
    %v402 = vpop.f32.mrf.mxu0
    %v403 = vadd.f32 0.0, %v402
    %v404 = vpop.f32.mrf.mxu0
    %v405 = vadd.f32 0.0, %v404
    %406 = vmatmul.bf16.gmra.mxu0 %v287
    %v407 = vpop.f32.mrf.mxu0
    %v408 = vadd.f32 0.0, %v407
    %v409 = vpop.f32.mrf.mxu0
    %v410 = vadd.f32 0.0, %v409
    %411 = vmatmul.bf16.gmra.mxu0 %v290
    %v412 = vpop.f32.mrf.mxu0
    %v413 = vadd.f32 0.0, %v412
    %v414 = vpop.f32.mrf.mxu0
    %v415 = vadd.f32 0.0, %v414
    %416 = vmatmul.bf16.gmra.mxu0 %v293
    %v417 = vpop.f32.mrf.mxu0
    %v418 = vadd.f32 0.0, %v417
    %v419 = vpop.f32.mrf.mxu0
    %v420 = vadd.f32 0.0, %v419
    %421 = vmatmul.bf16.gmra.mxu0 %v296
    %v422 = vpop.f32.mrf.mxu0
    %v423 = vadd.f32 0.0, %v422
    %v424 = vpop.f32.mrf.mxu0
    %v425 = vadd.f32 0.0, %v424
    %426 = vmatmul.bf16.gmra.mxu0 %v299
    %v427 = vpop.f32.mrf.mxu0
    %v428 = vadd.f32 0.0, %v427
    %v429 = vpop.f32.mrf.mxu0
    %v430 = vadd.f32 0.0, %v429
    %431 = vmatmul.bf16.gmra.mxu0 %v302
    %v432 = vpop.f32.mrf.mxu0
    %v433 = vadd.f32 0.0, %v432
    %v434 = vpop.f32.mrf.mxu0
    %v435 = vadd.f32 0.0, %v434
    %436 = vmatmul.bf16.gmra.mxu0 %v305
    %v437 = vpop.f32.mrf.mxu0
    %v438 = vadd.f32 0.0, %v437
    %v439 = vpop.f32.mrf.mxu0
    %v440 = vadd.f32 0.0, %v439
    %441 = vmatmul.bf16.gmra.mxu0 %v308
    %v442 = vpop.f32.mrf.mxu0
    %v443 = vadd.f32 0.0, %v442
    %v444 = vpop.f32.mrf.mxu0
    %v445 = vadd.f32 0.0, %v444
    %446 = vmatmul.bf16.gmra.mxu0 %v311
    %v447 = vpop.f32.mrf.mxu0
    %v448 = vadd.f32 0.0, %v447
    %v449 = vpop.f32.mrf.mxu0
    %v450 = vadd.f32 0.0, %v449
    %451 = vmatmul.bf16.gmra.mxu0 %v314
    %v452 = vpop.f32.mrf.mxu0
    %v453 = vadd.f32 0.0, %v452
    %v454 = vpop.f32.mrf.mxu0
    %v455 = vadd.f32 0.0, %v454
    %456 = vmatmul.bf16.gmra.mxu0 %v317
    %v457 = vpop.f32.mrf.mxu0
    %v458 = vadd.f32 0.0, %v457
    %v459 = vpop.f32.mrf.mxu0
    %v460 = vadd.f32 0.0, %v459
    %461 = vmatmul.bf16.gmra.mxu0 %v320
    %v462 = vpop.f32.mrf.mxu0
    %v463 = vadd.f32 0.0, %v462
    %v464 = vpop.f32.mrf.mxu0
    %v465 = vadd.f32 0.0, %v464
    %466 = vmatmul.bf16.gmra.mxu0 %v323
    %v467 = vpop.f32.mrf.mxu0
    %v468 = vadd.f32 0.0, %v467
    %v469 = vpop.f32.mrf.mxu0
    %v470 = vadd.f32 0.0, %v469
    %471 = vmatmul.bf16.gmra.mxu0 %v326
    %v472 = vpop.f32.mrf.mxu0
    %v473 = vadd.f32 0.0, %v472
    %v474 = vpop.f32.mrf.mxu0
    %v475 = vadd.f32 0.0, %v474
    %476 = vmatmul.bf16.gmra.mxu0 %v329
    %v477 = vpop.f32.mrf.mxu0
    %v478 = vadd.f32 0.0, %v477
    %v479 = vpop.f32.mrf.mxu0
    %v480 = vadd.f32 0.0, %v479
    %481 = vmatmul.bf16.gmra.mxu0 %v332
    %v482 = vpop.f32.mrf.mxu0
    %v483 = vadd.f32 0.0, %v482
    %v484 = vpop.f32.mrf.mxu0
    %v485 = vadd.f32 0.0, %v484
    %486 = vmatmul.bf16.gmra.mxu0 %v335
    %v487 = vpop.f32.mrf.mxu0
    %v488 = vadd.f32 0.0, %v487
    %v489 = vpop.f32.mrf.mxu0
    %v490 = vadd.f32 0.0, %v489
    %491 = vmatmul.bf16.gmra.mxu0 %v338
    %v492 = vpop.f32.mrf.mxu0
    %v493 = vadd.f32 0.0, %v492
    %v494 = vpop.f32.mrf.mxu0
    %v495 = vadd.f32 0.0, %v494
    %496 = vmatmul.bf16.gmra.mxu0 %v341
    %v497 = vpop.f32.mrf.mxu0
    %v498 = vadd.f32 0.0, %v497
    %v499 = vpop.f32.mrf.mxu0
    %v500 = vadd.f32 0.0, %v499
    %501 = vmatmul.bf16.gmra.mxu0 %v344
    %v502 = vpop.f32.mrf.mxu0
    %v503 = vadd.f32 0.0, %v502
    %v504 = vpop.f32.mrf.mxu0
    %v505 = vadd.f32 0.0, %v504
    %506 = vmatmul.bf16.gmra.mxu0 %v347
    %v507 = vpop.f32.mrf.mxu0
    %v508 = vadd.f32 0.0, %v507
    %v509 = vpop.f32.mrf.mxu0
    %v510 = vadd.f32 0.0, %v509
    %511 = vmatmul.bf16.gmra.mxu0 %v350
    %v512 = vpop.f32.mrf.mxu0
    %v513 = vadd.f32 0.0, %v512
    %v514 = vpop.f32.mrf.mxu0
    %v515 = vadd.f32 0.0, %v514
    %516 = vmatmul.bf16.gmra.mxu0 %v353
    %v517 = vpop.f32.mrf.mxu0
    %v518 = vadd.f32 0.0, %v517
    %v519 = vpop.f32.mrf.mxu0
    %v520 = vadd.f32 0.0, %v519
    %521 = vmatmul.bf16.gmra.mxu0 %v356
    %v522 = vpop.f32.mrf.mxu0
    %v523 = vadd.f32 0.0, %v522
    %v524 = vpop.f32.mrf.mxu0
    %v525 = vadd.f32 0.0, %v524
    %526 = vmatmul.bf16.gmra.mxu0 %v359
    %v527 = vpop.f32.mrf.mxu0
    %v528 = vadd.f32 0.0, %v527
    %v529 = vpop.f32.mrf.mxu0
    %v530 = vadd.f32 0.0, %v529
    %531 = vmatmul.bf16.gmra.mxu0 %v362
    %v532 = vpop.f32.mrf.mxu0
    %v533 = vadd.f32 0.0, %v532
    %v534 = vpop.f32.mrf.mxu0
    %v535 = vadd.f32 0.0, %v534
    %536 = vdwg.mxu0
    %v537 = vpack.c.bf16 %v378, %v378
    %v538 = vpack.c.bf16 %v380, %v380
    %v539 = vpack.c.bf16 %v383, %v383
    %v540 = vpack.c.bf16 %v385, %v385
    %v541 = vpack.c.bf16 %v388, %v388
    %v542 = vpack.c.bf16 %v390, %v390
    %v543 = vpack.c.bf16 %v393, %v393
    %v544 = vpack.c.bf16 %v395, %v395
    %v545 = vpack.c.bf16 %v398, %v398
    %v546 = vpack.c.bf16 %v400, %v400
    %v547 = vpack.c.bf16 %v403, %v403
    %v548 = vpack.c.bf16 %v405, %v405
    %v549 = vpack.c.bf16 %v408, %v408
    %v550 = vpack.c.bf16 %v410, %v410
    %v551 = vpack.c.bf16 %v413, %v413
    %v552 = vpack.c.bf16 %v415, %v415
    %v553 = vpack.c.bf16 %v418, %v418
    %v554 = vpack.c.bf16 %v420, %v420
    %v555 = vpack.c.bf16 %v423, %v423
    %v556 = vpack.c.bf16 %v425, %v425
    %v557 = vpack.c.bf16 %v428, %v428
    %v558 = vpack.c.bf16 %v430, %v430
    %v559 = vpack.c.bf16 %v433, %v433
    %v560 = vpack.c.bf16 %v435, %v435
    %v561 = vpack.c.bf16 %v438, %v438
    %v562 = vpack.c.bf16 %v440, %v440
    %v563 = vpack.c.bf16 %v443, %v443
    %v564 = vpack.c.bf16 %v445, %v445
    %v565 = vpack.c.bf16 %v448, %v448
    %v566 = vpack.c.bf16 %v450, %v450
    %v567 = vpack.c.bf16 %v453, %v453
    %v568 = vpack.c.bf16 %v455, %v455
    %v569 = vpack.c.bf16 %v458, %v458
    %v570 = vpack.c.bf16 %v460, %v460
    %v571 = vpack.c.bf16 %v463, %v463
    %v572 = vpack.c.bf16 %v465, %v465
    %v573 = vpack.c.bf16 %v468, %v468
    %v574 = vpack.c.bf16 %v470, %v470
    %v575 = vpack.c.bf16 %v473, %v473
    %v576 = vpack.c.bf16 %v475, %v475
    %v577 = vpack.c.bf16 %v478, %v478
    %v578 = vpack.c.bf16 %v480, %v480
    %v579 = vpack.c.bf16 %v483, %v483
    %v580 = vpack.c.bf16 %v485, %v485
    %v581 = vpack.c.bf16 %v488, %v488
    %v582 = vpack.c.bf16 %v490, %v490
    %v583 = vpack.c.bf16 %v493, %v493
    %v584 = vpack.c.bf16 %v495, %v495
    %v585 = vpack.c.bf16 %v498, %v498
    %v586 = vpack.c.bf16 %v500, %v500
    %v587 = vpack.c.bf16 %v503, %v503
    %v588 = vpack.c.bf16 %v505, %v505
    %v589 = vpack.c.bf16 %v508, %v508
    %v590 = vpack.c.bf16 %v510, %v510
    %v591 = vpack.c.bf16 %v513, %v513
    %v592 = vpack.c.bf16 %v515, %v515
    %v593 = vpack.c.bf16 %v518, %v518
    %v594 = vpack.c.bf16 %v520, %v520
    %v595 = vpack.c.bf16 %v523, %v523
    %v596 = vpack.c.bf16 %v525, %v525
    %v597 = vpack.c.bf16 %v528, %v528
    %v598 = vpack.c.bf16 %v530, %v530
    %v599 = vpack.c.bf16 %v533, %v533
    %v600 = vpack.c.bf16 %v535, %v535
    %v601 = vld [vmem:[%s2] sm:$0xff]
    %v602 = vld [vmem:[%s2 + $0x8] sm:$0xff]
    %v603 = vld [vmem:[%s2 + $0x10] sm:$0xff]
    %v604 = vld [vmem:[%s2 + $0x18] sm:$0xff]
    %v605 = vld [vmem:[%s2 + $0x20] sm:$0xff]
    %v606 = vld [vmem:[%s2 + $0x28] sm:$0xff]
    %v607 = vld [vmem:[%s2 + $0x30] sm:$0xff]
    %v608 = vld [vmem:[%s2 + $0x38] sm:$0xff]
    %v609 = vld [vmem:[%s2 + $0x40] sm:$0xff]
    %v610 = vld [vmem:[%s2 + $0x48] sm:$0xff]
    %v611 = vld [vmem:[%s2 + $0x50] sm:$0xff]
    %v612 = vld [vmem:[%s2 + $0x58] sm:$0xff]
    %v613 = vld [vmem:[%s2 + $0x60] sm:$0xff]
    %v614 = vld [vmem:[%s2 + $0x68] sm:$0xff]
    %v615 = vld [vmem:[%s2 + $0x70] sm:$0xff]
    %v616 = vld [vmem:[%s2 + $0x78] sm:$0xff]
    %v617 = vld [vmem:[%s2 + $0x80] sm:$0xff]
    %v618 = vld [vmem:[%s2 + $0x88] sm:$0xff]
    %v619 = vld [vmem:[%s2 + $0x90] sm:$0xff]
    %v620 = vld [vmem:[%s2 + $0x98] sm:$0xff]
    %v621 = vld [vmem:[%s2 + $0xa0] sm:$0xff]
    %v622 = vld [vmem:[%s2 + $0xa8] sm:$0xff]
    %v623 = vld [vmem:[%s2 + $0xb0] sm:$0xff]
    %v624 = vld [vmem:[%s2 + $0xb8] sm:$0xff]
    %v625 = vld [vmem:[%s2 + $0xc0] sm:$0xff]
    %v626 = vld [vmem:[%s2 + $0xc8] sm:$0xff]
    %v627 = vld [vmem:[%s2 + $0xd0] sm:$0xff]
    %v628 = vld [vmem:[%s2 + $0xd8] sm:$0xff]
    %v629 = vld [vmem:[%s2 + $0xe0] sm:$0xff]
    %v630 = vld [vmem:[%s2 + $0xe8] sm:$0xff]
    %v631 = vld [vmem:[%s2 + $0xf0] sm:$0xff]
    %v632 = vld [vmem:[%s2 + $0xf8] sm:$0xff]
    %v633 = vld [vmem:[%s2 + $0x100] sm:$0xff]
    %v634 = vld [vmem:[%s2 + $0x108] sm:$0xff]
    %v635 = vld [vmem:[%s2 + $0x110] sm:$0xff]
    %v636 = vld [vmem:[%s2 + $0x118] sm:$0xff]
    %v637 = vld [vmem:[%s2 + $0x120] sm:$0xff]
    %v638 = vld [vmem:[%s2 + $0x128] sm:$0xff]
    %v639 = vld [vmem:[%s2 + $0x130] sm:$0xff]
    %v640 = vld [vmem:[%s2 + $0x138] sm:$0xff]
    %v641 = vld [vmem:[%s2 + $0x140] sm:$0xff]
    %v642 = vld [vmem:[%s2 + $0x148] sm:$0xff]
    %v643 = vld [vmem:[%s2 + $0x150] sm:$0xff]
    %v644 = vld [vmem:[%s2 + $0x158] sm:$0xff]
    %v645 = vld [vmem:[%s2 + $0x160] sm:$0xff]
    %v646 = vld [vmem:[%s2 + $0x168] sm:$0xff]
    %v647 = vld [vmem:[%s2 + $0x170] sm:$0xff]
    %v648 = vld [vmem:[%s2 + $0x178] sm:$0xff]
    %v649 = vld [vmem:[%s2 + $0x180] sm:$0xff]
    %v650 = vld [vmem:[%s2 + $0x188] sm:$0xff]
    %v651 = vld [vmem:[%s2 + $0x190] sm:$0xff]
    %v652 = vld [vmem:[%s2 + $0x198] sm:$0xff]
    %v653 = vld [vmem:[%s2 + $0x1a0] sm:$0xff]
    %v654 = vld [vmem:[%s2 + $0x1a8] sm:$0xff]
    %v655 = vld [vmem:[%s2 + $0x1b0] sm:$0xff]
    %v656 = vld [vmem:[%s2 + $0x1b8] sm:$0xff]
    %v657 = vld [vmem:[%s2 + $0x1c0] sm:$0xff]
    %v658 = vld [vmem:[%s2 + $0x1c8] sm:$0xff]
    %v659 = vld [vmem:[%s2 + $0x1d0] sm:$0xff]
    %v660 = vld [vmem:[%s2 + $0x1d8] sm:$0xff]
    %v661 = vld [vmem:[%s2 + $0x1e0] sm:$0xff]
    %v662 = vld [vmem:[%s2 + $0x1e8] sm:$0xff]
    %v663 = vld [vmem:[%s2 + $0x1f0] sm:$0xff]
    %v664 = vld [vmem:[%s2 + $0x1f8] sm:$0xff]
    %v665 = vpack.c.bf16 %v601, %v601
    %v666 = vpack.c.bf16 %v602, %v602
    %v667 = vpack.c.bf16 %v603, %v603
    %v668 = vpack.c.bf16 %v604, %v604
    %v669 = vpack.c.bf16 %v605, %v605
    %v670 = vpack.c.bf16 %v606, %v606
    %v671 = vpack.c.bf16 %v607, %v607
    %v672 = vpack.c.bf16 %v608, %v608
    %v673 = vpack.c.bf16 %v609, %v609
    %v674 = vpack.c.bf16 %v610, %v610
    %v675 = vpack.c.bf16 %v611, %v611
    %v676 = vpack.c.bf16 %v612, %v612
    %v677 = vpack.c.bf16 %v613, %v613
    %v678 = vpack.c.bf16 %v614, %v614
    %v679 = vpack.c.bf16 %v615, %v615
    %v680 = vpack.c.bf16 %v616, %v616
    %v681 = vpack.c.bf16 %v617, %v617
    %v682 = vpack.c.bf16 %v618, %v618
    %v683 = vpack.c.bf16 %v619, %v619
    %v684 = vpack.c.bf16 %v620, %v620
    %v685 = vpack.c.bf16 %v621, %v621
    %v686 = vpack.c.bf16 %v622, %v622
    %v687 = vpack.c.bf16 %v623, %v623
    %v688 = vpack.c.bf16 %v624, %v624
    %v689 = vpack.c.bf16 %v625, %v625
    %v690 = vpack.c.bf16 %v626, %v626
    %v691 = vpack.c.bf16 %v627, %v627
    %v692 = vpack.c.bf16 %v628, %v628
    %v693 = vpack.c.bf16 %v629, %v629
    %v694 = vpack.c.bf16 %v630, %v630
    %v695 = vpack.c.bf16 %v631, %v631
    %v696 = vpack.c.bf16 %v632, %v632
    %v697 = vpack.c.bf16 %v633, %v633
    %v698 = vpack.c.bf16 %v634, %v634
    %v699 = vpack.c.bf16 %v635, %v635
    %v700 = vpack.c.bf16 %v636, %v636
    %v701 = vpack.c.bf16 %v637, %v637
    %v702 = vpack.c.bf16 %v638, %v638
    %v703 = vpack.c.bf16 %v639, %v639
    %v704 = vpack.c.bf16 %v640, %v640
    %v705 = vpack.c.bf16 %v641, %v641
    %v706 = vpack.c.bf16 %v642, %v642
    %v707 = vpack.c.bf16 %v643, %v643
    %v708 = vpack.c.bf16 %v644, %v644
    %v709 = vpack.c.bf16 %v645, %v645
    %v710 = vpack.c.bf16 %v646, %v646
    %v711 = vpack.c.bf16 %v647, %v647
    %v712 = vpack.c.bf16 %v648, %v648
    %v713 = vpack.c.bf16 %v649, %v649
    %v714 = vpack.c.bf16 %v650, %v650
    %v715 = vpack.c.bf16 %v651, %v651
    %v716 = vpack.c.bf16 %v652, %v652
    %v717 = vpack.c.bf16 %v653, %v653
    %v718 = vpack.c.bf16 %v654, %v654
    %v719 = vpack.c.bf16 %v655, %v655
    %v720 = vpack.c.bf16 %v656, %v656
    %v721 = vpack.c.bf16 %v657, %v657
    %v722 = vpack.c.bf16 %v658, %v658
    %v723 = vpack.c.bf16 %v659, %v659
    %v724 = vpack.c.bf16 %v660, %v660
    %v725 = vpack.c.bf16 %v661, %v661
    %v726 = vpack.c.bf16 %v662, %v662
    %v727 = vpack.c.bf16 %v663, %v663
    %v728 = vpack.c.bf16 %v664, %v664
    %730 = vset.pattern.permute.xlu0 0
    %731 = vperm.xlu0 %730, %v665
    %v732 = vpop.permute.xlu0 %731
    %v735 = vunpack.c.l.s4 839922192
    %v736 = vunpack.c.0.s8 %v735
    %v737 = vperm.slane %v732, %v736
    %739 = vset.pattern.permute.xlu0 0
    %740 = vperm.xlu0 %739, %v666
    %v741 = vpop.permute.xlu0 %740
    %v744 = vunpack.c.l.s4 839922192
    %v745 = vunpack.c.0.s8 %v744
    %v746 = vperm.slane %v741, %v745
    %748 = vset.pattern.permute.xlu0 0
    %749 = vperm.xlu0 %748, %v667
    %v750 = vpop.permute.xlu0 %749
    %v753 = vunpack.c.l.s4 839922192
    %v754 = vunpack.c.0.s8 %v753
    %v755 = vperm.slane %v750, %v754
    %757 = vset.pattern.permute.xlu0 0
    %758 = vperm.xlu0 %757, %v668
    %v759 = vpop.permute.xlu0 %758
    %v762 = vunpack.c.l.s4 839922192
    %v763 = vunpack.c.0.s8 %v762
    %v764 = vperm.slane %v759, %v763
    %766 = vset.pattern.permute.xlu0 0
    %767 = vperm.xlu0 %766, %v669
    %v768 = vpop.permute.xlu0 %767
    %v771 = vunpack.c.l.s4 839922192
    %v772 = vunpack.c.0.s8 %v771
    %v773 = vperm.slane %v768, %v772
    %775 = vset.pattern.permute.xlu0 0
    %776 = vperm.xlu0 %775, %v670
    %v777 = vpop.permute.xlu0 %776
    %v780 = vunpack.c.l.s4 839922192
    %v781 = vunpack.c.0.s8 %v780
    %v782 = vperm.slane %v777, %v781
    %784 = vset.pattern.permute.xlu0 0
    %785 = vperm.xlu0 %784, %v671
    %v786 = vpop.permute.xlu0 %785
    %v789 = vunpack.c.l.s4 839922192
    %v790 = vunpack.c.0.s8 %v789
    %v791 = vperm.slane %v786, %v790
    %793 = vset.pattern.permute.xlu0 0
    %794 = vperm.xlu0 %793, %v672
    %v795 = vpop.permute.xlu0 %794
    %v798 = vunpack.c.l.s4 839922192
    %v799 = vunpack.c.0.s8 %v798
    %v800 = vperm.slane %v795, %v799
    %802 = vset.pattern.permute.xlu0 0
    %803 = vperm.xlu0 %802, %v673
    %v804 = vpop.permute.xlu0 %803
    %v807 = vunpack.c.l.s4 839922192
    %v808 = vunpack.c.0.s8 %v807
    %v809 = vperm.slane %v804, %v808
    %811 = vset.pattern.permute.xlu0 0
    %812 = vperm.xlu0 %811, %v674
    %v813 = vpop.permute.xlu0 %812
    %v816 = vunpack.c.l.s4 839922192
    %v817 = vunpack.c.0.s8 %v816
    %v818 = vperm.slane %v813, %v817
    %820 = vset.pattern.permute.xlu0 0
    %821 = vperm.xlu0 %820, %v675
    %v822 = vpop.permute.xlu0 %821
    %v825 = vunpack.c.l.s4 839922192
    %v826 = vunpack.c.0.s8 %v825
    %v827 = vperm.slane %v822, %v826
    %829 = vset.pattern.permute.xlu0 0
    %830 = vperm.xlu0 %829, %v676
    %v831 = vpop.permute.xlu0 %830
    %v834 = vunpack.c.l.s4 839922192
    %v835 = vunpack.c.0.s8 %v834
    %v836 = vperm.slane %v831, %v835
    %838 = vset.pattern.permute.xlu0 0
    %839 = vperm.xlu0 %838, %v677
    %v840 = vpop.permute.xlu0 %839
    %v843 = vunpack.c.l.s4 839922192
    %v844 = vunpack.c.0.s8 %v843
    %v845 = vperm.slane %v840, %v844
    %847 = vset.pattern.permute.xlu0 0
    %848 = vperm.xlu0 %847, %v678
    %v849 = vpop.permute.xlu0 %848
    %v852 = vunpack.c.l.s4 839922192
    %v853 = vunpack.c.0.s8 %v852
    %v854 = vperm.slane %v849, %v853
    %856 = vset.pattern.permute.xlu0 0
    %857 = vperm.xlu0 %856, %v679
    %v858 = vpop.permute.xlu0 %857
    %v861 = vunpack.c.l.s4 839922192
    %v862 = vunpack.c.0.s8 %v861
    %v863 = vperm.slane %v858, %v862
    %865 = vset.pattern.permute.xlu0 0
    %866 = vperm.xlu0 %865, %v680
    %v867 = vpop.permute.xlu0 %866
    %v870 = vunpack.c.l.s4 839922192
    %v871 = vunpack.c.0.s8 %v870
    %v872 = vperm.slane %v867, %v871
    %874 = vset.pattern.permute.xlu0 0
    %875 = vperm.xlu0 %874, %v681
    %v876 = vpop.permute.xlu0 %875
    %v879 = vunpack.c.l.s4 839922192
    %v880 = vunpack.c.0.s8 %v879
    %v881 = vperm.slane %v876, %v880
    %883 = vset.pattern.permute.xlu0 0
    %884 = vperm.xlu0 %883, %v682
    %v885 = vpop.permute.xlu0 %884
    %v888 = vunpack.c.l.s4 839922192
    %v889 = vunpack.c.0.s8 %v888
    %v890 = vperm.slane %v885, %v889
    %892 = vset.pattern.permute.xlu0 0
    %893 = vperm.xlu0 %892, %v683
    %v894 = vpop.permute.xlu0 %893
    %v897 = vunpack.c.l.s4 839922192
    %v898 = vunpack.c.0.s8 %v897
    %v899 = vperm.slane %v894, %v898
    %901 = vset.pattern.permute.xlu0 0
    %902 = vperm.xlu0 %901, %v684
    %v903 = vpop.permute.xlu0 %902
    %v906 = vunpack.c.l.s4 839922192
    %v907 = vunpack.c.0.s8 %v906
    %v908 = vperm.slane %v903, %v907
    %910 = vset.pattern.permute.xlu0 0
    %911 = vperm.xlu0 %910, %v685
    %v912 = vpop.permute.xlu0 %911
    %v915 = vunpack.c.l.s4 839922192
    %v916 = vunpack.c.0.s8 %v915
    %v917 = vperm.slane %v912, %v916
    %919 = vset.pattern.permute.xlu0 0
    %920 = vperm.xlu0 %919, %v686
    %v921 = vpop.permute.xlu0 %920
    %v924 = vunpack.c.l.s4 839922192
    %v925 = vunpack.c.0.s8 %v924
    %v926 = vperm.slane %v921, %v925
    %928 = vset.pattern.permute.xlu0 0
    %929 = vperm.xlu0 %928, %v687
    %v930 = vpop.permute.xlu0 %929
    %v933 = vunpack.c.l.s4 839922192
    %v934 = vunpack.c.0.s8 %v933
    %v935 = vperm.slane %v930, %v934
    %937 = vset.pattern.permute.xlu0 0
    %938 = vperm.xlu0 %937, %v688
    %v939 = vpop.permute.xlu0 %938
    %v942 = vunpack.c.l.s4 839922192
    %v943 = vunpack.c.0.s8 %v942
    %v944 = vperm.slane %v939, %v943
    %946 = vset.pattern.permute.xlu0 0
    %947 = vperm.xlu0 %946, %v689
    %v948 = vpop.permute.xlu0 %947
    %v951 = vunpack.c.l.s4 839922192
    %v952 = vunpack.c.0.s8 %v951
    %v953 = vperm.slane %v948, %v952
    %955 = vset.pattern.permute.xlu0 0
    %956 = vperm.xlu0 %955, %v690
    %v957 = vpop.permute.xlu0 %956
    %v960 = vunpack.c.l.s4 839922192
    %v961 = vunpack.c.0.s8 %v960
    %v962 = vperm.slane %v957, %v961
    %964 = vset.pattern.permute.xlu0 0
    %965 = vperm.xlu0 %964, %v691
    %v966 = vpop.permute.xlu0 %965
    %v969 = vunpack.c.l.s4 839922192
    %v970 = vunpack.c.0.s8 %v969
    %v971 = vperm.slane %v966, %v970
    %973 = vset.pattern.permute.xlu0 0
    %974 = vperm.xlu0 %973, %v692
    %v975 = vpop.permute.xlu0 %974
    %v978 = vunpack.c.l.s4 839922192
    %v979 = vunpack.c.0.s8 %v978
    %v980 = vperm.slane %v975, %v979
    %982 = vset.pattern.permute.xlu0 0
    %983 = vperm.xlu0 %982, %v693
    %v984 = vpop.permute.xlu0 %983
    %v987 = vunpack.c.l.s4 839922192
    %v988 = vunpack.c.0.s8 %v987
    %v989 = vperm.slane %v984, %v988
    %991 = vset.pattern.permute.xlu0 0
    %992 = vperm.xlu0 %991, %v694
    %v993 = vpop.permute.xlu0 %992
    %v996 = vunpack.c.l.s4 839922192
    %v997 = vunpack.c.0.s8 %v996
    %v998 = vperm.slane %v993, %v997
    %1000 = vset.pattern.permute.xlu0 0
    %1001 = vperm.xlu0 %1000, %v695
    %v1002 = vpop.permute.xlu0 %1001
    %v1005 = vunpack.c.l.s4 839922192
    %v1006 = vunpack.c.0.s8 %v1005
    %v1007 = vperm.slane %v1002, %v1006
    %1009 = vset.pattern.permute.xlu0 0
    %1010 = vperm.xlu0 %1009, %v696
    %v1011 = vpop.permute.xlu0 %1010
    %v1014 = vunpack.c.l.s4 839922192
    %v1015 = vunpack.c.0.s8 %v1014
    %v1016 = vperm.slane %v1011, %v1015
    %1018 = vset.pattern.permute.xlu0 0
    %1019 = vperm.xlu0 %1018, %v697
    %v1020 = vpop.permute.xlu0 %1019
    %v1023 = vunpack.c.l.s4 839922192
    %v1024 = vunpack.c.0.s8 %v1023
    %v1025 = vperm.slane %v1020, %v1024
    %1027 = vset.pattern.permute.xlu0 0
    %1028 = vperm.xlu0 %1027, %v698
    %v1029 = vpop.permute.xlu0 %1028
    %v1032 = vunpack.c.l.s4 839922192
    %v1033 = vunpack.c.0.s8 %v1032
    %v1034 = vperm.slane %v1029, %v1033
    %1036 = vset.pattern.permute.xlu0 0
    %1037 = vperm.xlu0 %1036, %v699
    %v1038 = vpop.permute.xlu0 %1037
    %v1041 = vunpack.c.l.s4 839922192
    %v1042 = vunpack.c.0.s8 %v1041
    %v1043 = vperm.slane %v1038, %v1042
    %1045 = vset.pattern.permute.xlu0 0
    %1046 = vperm.xlu0 %1045, %v700
    %v1047 = vpop.permute.xlu0 %1046
    %v1050 = vunpack.c.l.s4 839922192
    %v1051 = vunpack.c.0.s8 %v1050
    %v1052 = vperm.slane %v1047, %v1051
    %1054 = vset.pattern.permute.xlu0 0
    %1055 = vperm.xlu0 %1054, %v701
    %v1056 = vpop.permute.xlu0 %1055
    %v1059 = vunpack.c.l.s4 839922192
    %v1060 = vunpack.c.0.s8 %v1059
    %v1061 = vperm.slane %v1056, %v1060
    %1063 = vset.pattern.permute.xlu0 0
    %1064 = vperm.xlu0 %1063, %v702
    %v1065 = vpop.permute.xlu0 %1064
    %v1068 = vunpack.c.l.s4 839922192
    %v1069 = vunpack.c.0.s8 %v1068
    %v1070 = vperm.slane %v1065, %v1069
    %1072 = vset.pattern.permute.xlu0 0
    %1073 = vperm.xlu0 %1072, %v703
    %v1074 = vpop.permute.xlu0 %1073
    %v1077 = vunpack.c.l.s4 839922192
    %v1078 = vunpack.c.0.s8 %v1077
    %v1079 = vperm.slane %v1074, %v1078
    %1081 = vset.pattern.permute.xlu0 0
    %1082 = vperm.xlu0 %1081, %v704
    %v1083 = vpop.permute.xlu0 %1082
    %v1086 = vunpack.c.l.s4 839922192
    %v1087 = vunpack.c.0.s8 %v1086
    %v1088 = vperm.slane %v1083, %v1087
    %1090 = vset.pattern.permute.xlu0 0
    %1091 = vperm.xlu0 %1090, %v705
    %v1092 = vpop.permute.xlu0 %1091
    %v1095 = vunpack.c.l.s4 839922192
    %v1096 = vunpack.c.0.s8 %v1095
    %v1097 = vperm.slane %v1092, %v1096
    %1099 = vset.pattern.permute.xlu0 0
    %1100 = vperm.xlu0 %1099, %v706
    %v1101 = vpop.permute.xlu0 %1100
    %v1104 = vunpack.c.l.s4 839922192
    %v1105 = vunpack.c.0.s8 %v1104
    %v1106 = vperm.slane %v1101, %v1105
    %1108 = vset.pattern.permute.xlu0 0
    %1109 = vperm.xlu0 %1108, %v707
    %v1110 = vpop.permute.xlu0 %1109
    %v1113 = vunpack.c.l.s4 839922192
    %v1114 = vunpack.c.0.s8 %v1113
    %v1115 = vperm.slane %v1110, %v1114
    %1117 = vset.pattern.permute.xlu0 0
    %1118 = vperm.xlu0 %1117, %v708
    %v1119 = vpop.permute.xlu0 %1118
    %v1122 = vunpack.c.l.s4 839922192
    %v1123 = vunpack.c.0.s8 %v1122
    %v1124 = vperm.slane %v1119, %v1123
    %1126 = vset.pattern.permute.xlu0 0
    %1127 = vperm.xlu0 %1126, %v709
    %v1128 = vpop.permute.xlu0 %1127
    %v1131 = vunpack.c.l.s4 839922192
    %v1132 = vunpack.c.0.s8 %v1131
    %v1133 = vperm.slane %v1128, %v1132
    %1135 = vset.pattern.permute.xlu0 0
    %1136 = vperm.xlu0 %1135, %v710
    %v1137 = vpop.permute.xlu0 %1136
    %v1140 = vunpack.c.l.s4 839922192
    %v1141 = vunpack.c.0.s8 %v1140
    %v1142 = vperm.slane %v1137, %v1141
    %1144 = vset.pattern.permute.xlu0 0
    %1145 = vperm.xlu0 %1144, %v711
    %v1146 = vpop.permute.xlu0 %1145
    %v1149 = vunpack.c.l.s4 839922192
    %v1150 = vunpack.c.0.s8 %v1149
    %v1151 = vperm.slane %v1146, %v1150
    %1153 = vset.pattern.permute.xlu0 0
    %1154 = vperm.xlu0 %1153, %v712
    %v1155 = vpop.permute.xlu0 %1154
    %v1158 = vunpack.c.l.s4 839922192
    %v1159 = vunpack.c.0.s8 %v1158
    %v1160 = vperm.slane %v1155, %v1159
    %1162 = vset.pattern.permute.xlu0 0
    %1163 = vperm.xlu0 %1162, %v713
    %v1164 = vpop.permute.xlu0 %1163
    %v1167 = vunpack.c.l.s4 839922192
    %v1168 = vunpack.c.0.s8 %v1167
    %v1169 = vperm.slane %v1164, %v1168
    %1171 = vset.pattern.permute.xlu0 0
    %1172 = vperm.xlu0 %1171, %v714
    %v1173 = vpop.permute.xlu0 %1172
    %v1176 = vunpack.c.l.s4 839922192
    %v1177 = vunpack.c.0.s8 %v1176
    %v1178 = vperm.slane %v1173, %v1177
    %1180 = vset.pattern.permute.xlu0 0
    %1181 = vperm.xlu0 %1180, %v715
    %v1182 = vpop.permute.xlu0 %1181
    %v1185 = vunpack.c.l.s4 839922192
    %v1186 = vunpack.c.0.s8 %v1185
    %v1187 = vperm.slane %v1182, %v1186
    %1189 = vset.pattern.permute.xlu0 0
    %1190 = vperm.xlu0 %1189, %v716
    %v1191 = vpop.permute.xlu0 %1190
    %v1194 = vunpack.c.l.s4 839922192
    %v1195 = vunpack.c.0.s8 %v1194
    %v1196 = vperm.slane %v1191, %v1195
    %1198 = vset.pattern.permute.xlu0 0
    %1199 = vperm.xlu0 %1198, %v717
    %v1200 = vpop.permute.xlu0 %1199
    %v1203 = vunpack.c.l.s4 839922192
    %v1204 = vunpack.c.0.s8 %v1203
    %v1205 = vperm.slane %v1200, %v1204
    %1207 = vset.pattern.permute.xlu0 0
    %1208 = vperm.xlu0 %1207, %v718
    %v1209 = vpop.permute.xlu0 %1208
    %v1212 = vunpack.c.l.s4 839922192
    %v1213 = vunpack.c.0.s8 %v1212
    %v1214 = vperm.slane %v1209, %v1213
    %1216 = vset.pattern.permute.xlu0 0
    %1217 = vperm.xlu0 %1216, %v719
    %v1218 = vpop.permute.xlu0 %1217
    %v1221 = vunpack.c.l.s4 839922192
    %v1222 = vunpack.c.0.s8 %v1221
    %v1223 = vperm.slane %v1218, %v1222
    %1225 = vset.pattern.permute.xlu0 0
    %1226 = vperm.xlu0 %1225, %v720
    %v1227 = vpop.permute.xlu0 %1226
    %v1230 = vunpack.c.l.s4 839922192
    %v1231 = vunpack.c.0.s8 %v1230
    %v1232 = vperm.slane %v1227, %v1231
    %1234 = vset.pattern.permute.xlu0 0
    %1235 = vperm.xlu0 %1234, %v721
    %v1236 = vpop.permute.xlu0 %1235
    %v1239 = vunpack.c.l.s4 839922192
    %v1240 = vunpack.c.0.s8 %v1239
    %v1241 = vperm.slane %v1236, %v1240
    %1243 = vset.pattern.permute.xlu0 0
    %1244 = vperm.xlu0 %1243, %v722
    %v1245 = vpop.permute.xlu0 %1244
    %v1248 = vunpack.c.l.s4 839922192
    %v1249 = vunpack.c.0.s8 %v1248
    %v1250 = vperm.slane %v1245, %v1249
    %1252 = vset.pattern.permute.xlu0 0
    %1253 = vperm.xlu0 %1252, %v723
    %v1254 = vpop.permute.xlu0 %1253
    %v1257 = vunpack.c.l.s4 839922192
    %v1258 = vunpack.c.0.s8 %v1257
    %v1259 = vperm.slane %v1254, %v1258
    %1261 = vset.pattern.permute.xlu0 0
    %1262 = vperm.xlu0 %1261, %v724
    %v1263 = vpop.permute.xlu0 %1262
    %v1266 = vunpack.c.l.s4 839922192
    %v1267 = vunpack.c.0.s8 %v1266
    %v1268 = vperm.slane %v1263, %v1267
    %1270 = vset.pattern.permute.xlu0 0
    %1271 = vperm.xlu0 %1270, %v725
    %v1272 = vpop.permute.xlu0 %1271
    %v1275 = vunpack.c.l.s4 839922192
    %v1276 = vunpack.c.0.s8 %v1275
    %v1277 = vperm.slane %v1272, %v1276
    %1279 = vset.pattern.permute.xlu0 0
    %1280 = vperm.xlu0 %1279, %v726
    %v1281 = vpop.permute.xlu0 %1280
    %v1284 = vunpack.c.l.s4 839922192
    %v1285 = vunpack.c.0.s8 %v1284
    %v1286 = vperm.slane %v1281, %v1285
    %1288 = vset.pattern.permute.xlu0 0
    %1289 = vperm.xlu0 %1288, %v727
    %v1290 = vpop.permute.xlu0 %1289
    %v1293 = vunpack.c.l.s4 839922192
    %v1294 = vunpack.c.0.s8 %v1293
    %v1295 = vperm.slane %v1290, %v1294
    %1297 = vset.pattern.permute.xlu0 0
    %1298 = vperm.xlu0 %1297, %v728
    %v1299 = vpop.permute.xlu0 %1298
    %v1302 = vunpack.c.l.s4 839922192
    %v1303 = vunpack.c.0.s8 %v1302
    %v1304 = vperm.slane %v1299, %v1303
    %v1305 = vunpack.c.l.bf16 %v537
    %v1306 = vunpack.c.l.bf16 %v538
    %v1307 = vunpack.c.l.bf16 %v539
    %v1308 = vunpack.c.l.bf16 %v540
    %v1309 = vunpack.c.l.bf16 %v541
    %v1310 = vunpack.c.l.bf16 %v542
    %v1311 = vunpack.c.l.bf16 %v543
    %v1312 = vunpack.c.l.bf16 %v544
    %v1313 = vunpack.c.l.bf16 %v545
    %v1314 = vunpack.c.l.bf16 %v546
    %v1315 = vunpack.c.l.bf16 %v547
    %v1316 = vunpack.c.l.bf16 %v548
    %v1317 = vunpack.c.l.bf16 %v549
    %v1318 = vunpack.c.l.bf16 %v550
    %v1319 = vunpack.c.l.bf16 %v551
    %v1320 = vunpack.c.l.bf16 %v552
    %v1321 = vunpack.c.l.bf16 %v553
    %v1322 = vunpack.c.l.bf16 %v554
    %v1323 = vunpack.c.l.bf16 %v555
    %v1324 = vunpack.c.l.bf16 %v556
    %v1325 = vunpack.c.l.bf16 %v557
    %v1326 = vunpack.c.l.bf16 %v558
    %v1327 = vunpack.c.l.bf16 %v559
    %v1328 = vunpack.c.l.bf16 %v560
    %v1329 = vunpack.c.l.bf16 %v561
    %v1330 = vunpack.c.l.bf16 %v562
    %v1331 = vunpack.c.l.bf16 %v563
    %v1332 = vunpack.c.l.bf16 %v564
    %v1333 = vunpack.c.l.bf16 %v565
    %v1334 = vunpack.c.l.bf16 %v566
    %v1335 = vunpack.c.l.bf16 %v567
    %v1336 = vunpack.c.l.bf16 %v568
    %v1337 = vunpack.c.l.bf16 %v569
    %v1338 = vunpack.c.l.bf16 %v570
    %v1339 = vunpack.c.l.bf16 %v571
    %v1340 = vunpack.c.l.bf16 %v572
    %v1341 = vunpack.c.l.bf16 %v573
    %v1342 = vunpack.c.l.bf16 %v574
    %v1343 = vunpack.c.l.bf16 %v575
    %v1344 = vunpack.c.l.bf16 %v576
    %v1345 = vunpack.c.l.bf16 %v577
    %v1346 = vunpack.c.l.bf16 %v578
    %v1347 = vunpack.c.l.bf16 %v579
    %v1348 = vunpack.c.l.bf16 %v580
    %v1349 = vunpack.c.l.bf16 %v581
    %v1350 = vunpack.c.l.bf16 %v582
    %v1351 = vunpack.c.l.bf16 %v583
    %v1352 = vunpack.c.l.bf16 %v584
    %v1353 = vunpack.c.l.bf16 %v585
    %v1354 = vunpack.c.l.bf16 %v586
    %v1355 = vunpack.c.l.bf16 %v587
    %v1356 = vunpack.c.l.bf16 %v588
    %v1357 = vunpack.c.l.bf16 %v589
    %v1358 = vunpack.c.l.bf16 %v590
    %v1359 = vunpack.c.l.bf16 %v591
    %v1360 = vunpack.c.l.bf16 %v592
    %v1361 = vunpack.c.l.bf16 %v593
    %v1362 = vunpack.c.l.bf16 %v594
    %v1363 = vunpack.c.l.bf16 %v595
    %v1364 = vunpack.c.l.bf16 %v596
    %v1365 = vunpack.c.l.bf16 %v597
    %v1366 = vunpack.c.l.bf16 %v598
    %v1367 = vunpack.c.l.bf16 %v599
    %v1368 = vunpack.c.l.bf16 %v600
    %v1369 = vunpack.c.l.bf16 %v737
    %v1370 = vunpack.c.l.bf16 %v746
    %v1371 = vunpack.c.l.bf16 %v755
    %v1372 = vunpack.c.l.bf16 %v764
    %v1373 = vunpack.c.l.bf16 %v773
    %v1374 = vunpack.c.l.bf16 %v782
    %v1375 = vunpack.c.l.bf16 %v791
    %v1376 = vunpack.c.l.bf16 %v800
    %v1377 = vunpack.c.l.bf16 %v809
    %v1378 = vunpack.c.l.bf16 %v818
    %v1379 = vunpack.c.l.bf16 %v827
    %v1380 = vunpack.c.l.bf16 %v836
    %v1381 = vunpack.c.l.bf16 %v845
    %v1382 = vunpack.c.l.bf16 %v854
    %v1383 = vunpack.c.l.bf16 %v863
    %v1384 = vunpack.c.l.bf16 %v872
    %v1385 = vunpack.c.l.bf16 %v881
    %v1386 = vunpack.c.l.bf16 %v890
    %v1387 = vunpack.c.l.bf16 %v899
    %v1388 = vunpack.c.l.bf16 %v908
    %v1389 = vunpack.c.l.bf16 %v917
    %v1390 = vunpack.c.l.bf16 %v926
    %v1391 = vunpack.c.l.bf16 %v935
    %v1392 = vunpack.c.l.bf16 %v944
    %v1393 = vunpack.c.l.bf16 %v953
    %v1394 = vunpack.c.l.bf16 %v962
    %v1395 = vunpack.c.l.bf16 %v971
    %v1396 = vunpack.c.l.bf16 %v980
    %v1397 = vunpack.c.l.bf16 %v989
    %v1398 = vunpack.c.l.bf16 %v998
    %v1399 = vunpack.c.l.bf16 %v1007
    %v1400 = vunpack.c.l.bf16 %v1016
    %v1401 = vunpack.c.l.bf16 %v1025
    %v1402 = vunpack.c.l.bf16 %v1034
    %v1403 = vunpack.c.l.bf16 %v1043
    %v1404 = vunpack.c.l.bf16 %v1052
    %v1405 = vunpack.c.l.bf16 %v1061
    %v1406 = vunpack.c.l.bf16 %v1070
    %v1407 = vunpack.c.l.bf16 %v1079
    %v1408 = vunpack.c.l.bf16 %v1088
    %v1409 = vunpack.c.l.bf16 %v1097
    %v1410 = vunpack.c.l.bf16 %v1106
    %v1411 = vunpack.c.l.bf16 %v1115
    %v1412 = vunpack.c.l.bf16 %v1124
    %v1413 = vunpack.c.l.bf16 %v1133
    %v1414 = vunpack.c.l.bf16 %v1142
    %v1415 = vunpack.c.l.bf16 %v1151
    %v1416 = vunpack.c.l.bf16 %v1160
    %v1417 = vunpack.c.l.bf16 %v1169
    %v1418 = vunpack.c.l.bf16 %v1178
    %v1419 = vunpack.c.l.bf16 %v1187
    %v1420 = vunpack.c.l.bf16 %v1196
    %v1421 = vunpack.c.l.bf16 %v1205
    %v1422 = vunpack.c.l.bf16 %v1214
    %v1423 = vunpack.c.l.bf16 %v1223
    %v1424 = vunpack.c.l.bf16 %v1232
    %v1425 = vunpack.c.l.bf16 %v1241
    %v1426 = vunpack.c.l.bf16 %v1250
    %v1427 = vunpack.c.l.bf16 %v1259
    %v1428 = vunpack.c.l.bf16 %v1268
    %v1429 = vunpack.c.l.bf16 %v1277
    %v1430 = vunpack.c.l.bf16 %v1286
    %v1431 = vunpack.c.l.bf16 %v1295
    %v1432 = vunpack.c.l.bf16 %v1304
    %v1433 = vadd.f32 %v1305, %v1369
    %v1434 = vadd.f32 %v1306, %v1370
    %v1435 = vadd.f32 %v1307, %v1371
    %v1436 = vadd.f32 %v1308, %v1372
    %v1437 = vadd.f32 %v1309, %v1373
    %v1438 = vadd.f32 %v1310, %v1374
    %v1439 = vadd.f32 %v1311, %v1375
    %v1440 = vadd.f32 %v1312, %v1376
    %v1441 = vadd.f32 %v1313, %v1377
    %v1442 = vadd.f32 %v1314, %v1378
    %v1443 = vadd.f32 %v1315, %v1379
    %v1444 = vadd.f32 %v1316, %v1380
    %v1445 = vadd.f32 %v1317, %v1381
    %v1446 = vadd.f32 %v1318, %v1382
    %v1447 = vadd.f32 %v1319, %v1383
    %v1448 = vadd.f32 %v1320, %v1384
    %v1449 = vadd.f32 %v1321, %v1385
    %v1450 = vadd.f32 %v1322, %v1386
    %v1451 = vadd.f32 %v1323, %v1387
    %v1452 = vadd.f32 %v1324, %v1388
    %v1453 = vadd.f32 %v1325, %v1389
    %v1454 = vadd.f32 %v1326, %v1390
    %v1455 = vadd.f32 %v1327, %v1391
    %v1456 = vadd.f32 %v1328, %v1392
    %v1457 = vadd.f32 %v1329, %v1393
    %v1458 = vadd.f32 %v1330, %v1394
    %v1459 = vadd.f32 %v1331, %v1395
    %v1460 = vadd.f32 %v1332, %v1396
    %v1461 = vadd.f32 %v1333, %v1397
    %v1462 = vadd.f32 %v1334, %v1398
    %v1463 = vadd.f32 %v1335, %v1399
    %v1464 = vadd.f32 %v1336, %v1400
    %v1465 = vadd.f32 %v1337, %v1401
    %v1466 = vadd.f32 %v1338, %v1402
    %v1467 = vadd.f32 %v1339, %v1403
    %v1468 = vadd.f32 %v1340, %v1404
    %v1469 = vadd.f32 %v1341, %v1405
    %v1470 = vadd.f32 %v1342, %v1406
    %v1471 = vadd.f32 %v1343, %v1407
    %v1472 = vadd.f32 %v1344, %v1408
    %v1473 = vadd.f32 %v1345, %v1409
    %v1474 = vadd.f32 %v1346, %v1410
    %v1475 = vadd.f32 %v1347, %v1411
    %v1476 = vadd.f32 %v1348, %v1412
    %v1477 = vadd.f32 %v1349, %v1413
    %v1478 = vadd.f32 %v1350, %v1414
    %v1479 = vadd.f32 %v1351, %v1415
    %v1480 = vadd.f32 %v1352, %v1416
    %v1481 = vadd.f32 %v1353, %v1417
    %v1482 = vadd.f32 %v1354, %v1418
    %v1483 = vadd.f32 %v1355, %v1419
    %v1484 = vadd.f32 %v1356, %v1420
    %v1485 = vadd.f32 %v1357, %v1421
    %v1486 = vadd.f32 %v1358, %v1422
    %v1487 = vadd.f32 %v1359, %v1423
    %v1488 = vadd.f32 %v1360, %v1424
    %v1489 = vadd.f32 %v1361, %v1425
    %v1490 = vadd.f32 %v1362, %v1426
    %v1491 = vadd.f32 %v1363, %v1427
    %v1492 = vadd.f32 %v1364, %v1428
    %v1493 = vadd.f32 %v1365, %v1429
    %v1494 = vadd.f32 %v1366, %v1430
    %v1495 = vadd.f32 %v1367, %v1431
    %v1496 = vadd.f32 %v1368, %v1432
    %v1497 = vpack.c.bf16 %v1433, %v1433
    %v1498 = vpack.c.bf16 %v1434, %v1434
    %v1499 = vpack.c.bf16 %v1435, %v1435
    %v1500 = vpack.c.bf16 %v1436, %v1436
    %v1501 = vpack.c.bf16 %v1437, %v1437
    %v1502 = vpack.c.bf16 %v1438, %v1438
    %v1503 = vpack.c.bf16 %v1439, %v1439
    %v1504 = vpack.c.bf16 %v1440, %v1440
    %v1505 = vpack.c.bf16 %v1441, %v1441
    %v1506 = vpack.c.bf16 %v1442, %v1442
    %v1507 = vpack.c.bf16 %v1443, %v1443
    %v1508 = vpack.c.bf16 %v1444, %v1444
    %v1509 = vpack.c.bf16 %v1445, %v1445
    %v1510 = vpack.c.bf16 %v1446, %v1446
    %v1511 = vpack.c.bf16 %v1447, %v1447
    %v1512 = vpack.c.bf16 %v1448, %v1448
    %v1513 = vpack.c.bf16 %v1449, %v1449
    %v1514 = vpack.c.bf16 %v1450, %v1450
    %v1515 = vpack.c.bf16 %v1451, %v1451
    %v1516 = vpack.c.bf16 %v1452, %v1452
    %v1517 = vpack.c.bf16 %v1453, %v1453
    %v1518 = vpack.c.bf16 %v1454, %v1454
    %v1519 = vpack.c.bf16 %v1455, %v1455
    %v1520 = vpack.c.bf16 %v1456, %v1456
    %v1521 = vpack.c.bf16 %v1457, %v1457
    %v1522 = vpack.c.bf16 %v1458, %v1458
    %v1523 = vpack.c.bf16 %v1459, %v1459
    %v1524 = vpack.c.bf16 %v1460, %v1460
    %v1525 = vpack.c.bf16 %v1461, %v1461
    %v1526 = vpack.c.bf16 %v1462, %v1462
    %v1527 = vpack.c.bf16 %v1463, %v1463
    %v1528 = vpack.c.bf16 %v1464, %v1464
    %v1529 = vpack.c.bf16 %v1465, %v1465
    %v1530 = vpack.c.bf16 %v1466, %v1466
    %v1531 = vpack.c.bf16 %v1467, %v1467
    %v1532 = vpack.c.bf16 %v1468, %v1468
    %v1533 = vpack.c.bf16 %v1469, %v1469
    %v1534 = vpack.c.bf16 %v1470, %v1470
    %v1535 = vpack.c.bf16 %v1471, %v1471
    %v1536 = vpack.c.bf16 %v1472, %v1472
    %v1537 = vpack.c.bf16 %v1473, %v1473
    %v1538 = vpack.c.bf16 %v1474, %v1474
    %v1539 = vpack.c.bf16 %v1475, %v1475
    %v1540 = vpack.c.bf16 %v1476, %v1476
    %v1541 = vpack.c.bf16 %v1477, %v1477
    %v1542 = vpack.c.bf16 %v1478, %v1478
    %v1543 = vpack.c.bf16 %v1479, %v1479
    %v1544 = vpack.c.bf16 %v1480, %v1480
    %v1545 = vpack.c.bf16 %v1481, %v1481
    %v1546 = vpack.c.bf16 %v1482, %v1482
    %v1547 = vpack.c.bf16 %v1483, %v1483
    %v1548 = vpack.c.bf16 %v1484, %v1484
    %v1549 = vpack.c.bf16 %v1485, %v1485
    %v1550 = vpack.c.bf16 %v1486, %v1486
    %v1551 = vpack.c.bf16 %v1487, %v1487
    %v1552 = vpack.c.bf16 %v1488, %v1488
    %v1553 = vpack.c.bf16 %v1489, %v1489
    %v1554 = vpack.c.bf16 %v1490, %v1490
    %v1555 = vpack.c.bf16 %v1491, %v1491
    %v1556 = vpack.c.bf16 %v1492, %v1492
    %v1557 = vpack.c.bf16 %v1493, %v1493
    %v1558 = vpack.c.bf16 %v1494, %v1494
    %v1559 = vpack.c.bf16 %v1495, %v1495
    %v1560 = vpack.c.bf16 %v1496, %v1496
    %v1561 = vunpack.c.l.bf16 %v1497
    %v1562 = vunpack.c.l.bf16 %v1498
    %v1563 = vunpack.c.l.bf16 %v1499
    %v1564 = vunpack.c.l.bf16 %v1500
    %v1565 = vunpack.c.l.bf16 %v1501
    %v1566 = vunpack.c.l.bf16 %v1502
    %v1567 = vunpack.c.l.bf16 %v1503
    %v1568 = vunpack.c.l.bf16 %v1504
    %v1569 = vunpack.c.l.bf16 %v1505
    %v1570 = vunpack.c.l.bf16 %v1506
    %v1571 = vunpack.c.l.bf16 %v1507
    %v1572 = vunpack.c.l.bf16 %v1508
    %v1573 = vunpack.c.l.bf16 %v1509
    %v1574 = vunpack.c.l.bf16 %v1510
    %v1575 = vunpack.c.l.bf16 %v1511
    %v1576 = vunpack.c.l.bf16 %v1512
    %v1577 = vunpack.c.l.bf16 %v1513
    %v1578 = vunpack.c.l.bf16 %v1514
    %v1579 = vunpack.c.l.bf16 %v1515
    %v1580 = vunpack.c.l.bf16 %v1516
    %v1581 = vunpack.c.l.bf16 %v1517
    %v1582 = vunpack.c.l.bf16 %v1518
    %v1583 = vunpack.c.l.bf16 %v1519
    %v1584 = vunpack.c.l.bf16 %v1520
    %v1585 = vunpack.c.l.bf16 %v1521
    %v1586 = vunpack.c.l.bf16 %v1522
    %v1587 = vunpack.c.l.bf16 %v1523
    %v1588 = vunpack.c.l.bf16 %v1524
    %v1589 = vunpack.c.l.bf16 %v1525
    %v1590 = vunpack.c.l.bf16 %v1526
    %v1591 = vunpack.c.l.bf16 %v1527
    %v1592 = vunpack.c.l.bf16 %v1528
    %v1593 = vunpack.c.l.bf16 %v1529
    %v1594 = vunpack.c.l.bf16 %v1530
    %v1595 = vunpack.c.l.bf16 %v1531
    %v1596 = vunpack.c.l.bf16 %v1532
    %v1597 = vunpack.c.l.bf16 %v1533
    %v1598 = vunpack.c.l.bf16 %v1534
    %v1599 = vunpack.c.l.bf16 %v1535
    %v1600 = vunpack.c.l.bf16 %v1536
    %v1601 = vunpack.c.l.bf16 %v1537
    %v1602 = vunpack.c.l.bf16 %v1538
    %v1603 = vunpack.c.l.bf16 %v1539
    %v1604 = vunpack.c.l.bf16 %v1540
    %v1605 = vunpack.c.l.bf16 %v1541
    %v1606 = vunpack.c.l.bf16 %v1542
    %v1607 = vunpack.c.l.bf16 %v1543
    %v1608 = vunpack.c.l.bf16 %v1544
    %v1609 = vunpack.c.l.bf16 %v1545
    %v1610 = vunpack.c.l.bf16 %v1546
    %v1611 = vunpack.c.l.bf16 %v1547
    %v1612 = vunpack.c.l.bf16 %v1548
    %v1613 = vunpack.c.l.bf16 %v1549
    %v1614 = vunpack.c.l.bf16 %v1550
    %v1615 = vunpack.c.l.bf16 %v1551
    %v1616 = vunpack.c.l.bf16 %v1552
    %v1617 = vunpack.c.l.bf16 %v1553
    %v1618 = vunpack.c.l.bf16 %v1554
    %v1619 = vunpack.c.l.bf16 %v1555
    %v1620 = vunpack.c.l.bf16 %v1556
    %v1621 = vunpack.c.l.bf16 %v1557
    %v1622 = vunpack.c.l.bf16 %v1558
    %v1623 = vunpack.c.l.bf16 %v1559
    %v1624 = vunpack.c.l.bf16 %v1560
    %v1625 = vmax.f32 %v1561, 0.0
    %v1626 = vmax.f32 %v1562, 0.0
    %v1627 = vmax.f32 %v1563, 0.0
    %v1628 = vmax.f32 %v1564, 0.0
    %v1629 = vmax.f32 %v1565, 0.0
    %v1630 = vmax.f32 %v1566, 0.0
    %v1631 = vmax.f32 %v1567, 0.0
    %v1632 = vmax.f32 %v1568, 0.0
    %v1633 = vmax.f32 %v1569, 0.0
    %v1634 = vmax.f32 %v1570, 0.0
    %v1635 = vmax.f32 %v1571, 0.0
    %v1636 = vmax.f32 %v1572, 0.0
    %v1637 = vmax.f32 %v1573, 0.0
    %v1638 = vmax.f32 %v1574, 0.0
    %v1639 = vmax.f32 %v1575, 0.0
    %v1640 = vmax.f32 %v1576, 0.0
    %v1641 = vmax.f32 %v1577, 0.0
    %v1642 = vmax.f32 %v1578, 0.0
    %v1643 = vmax.f32 %v1579, 0.0
    %v1644 = vmax.f32 %v1580, 0.0
    %v1645 = vmax.f32 %v1581, 0.0
    %v1646 = vmax.f32 %v1582, 0.0
    %v1647 = vmax.f32 %v1583, 0.0
    %v1648 = vmax.f32 %v1584, 0.0
    %v1649 = vmax.f32 %v1585, 0.0
    %v1650 = vmax.f32 %v1586, 0.0
    %v1651 = vmax.f32 %v1587, 0.0
    %v1652 = vmax.f32 %v1588, 0.0
    %v1653 = vmax.f32 %v1589, 0.0
    %v1654 = vmax.f32 %v1590, 0.0
    %v1655 = vmax.f32 %v1591, 0.0
    %v1656 = vmax.f32 %v1592, 0.0
    %v1657 = vmax.f32 %v1593, 0.0
    %v1658 = vmax.f32 %v1594, 0.0
    %v1659 = vmax.f32 %v1595, 0.0
    %v1660 = vmax.f32 %v1596, 0.0
    %v1661 = vmax.f32 %v1597, 0.0
    %v1662 = vmax.f32 %v1598, 0.0
    %v1663 = vmax.f32 %v1599, 0.0
    %v1664 = vmax.f32 %v1600, 0.0
    %v1665 = vmax.f32 %v1601, 0.0
    %v1666 = vmax.f32 %v1602, 0.0
    %v1667 = vmax.f32 %v1603, 0.0
    %v1668 = vmax.f32 %v1604, 0.0
    %v1669 = vmax.f32 %v1605, 0.0
    %v1670 = vmax.f32 %v1606, 0.0
    %v1671 = vmax.f32 %v1607, 0.0
    %v1672 = vmax.f32 %v1608, 0.0
    %v1673 = vmax.f32 %v1609, 0.0
    %v1674 = vmax.f32 %v1610, 0.0
    %v1675 = vmax.f32 %v1611, 0.0
    %v1676 = vmax.f32 %v1612, 0.0
    %v1677 = vmax.f32 %v1613, 0.0
    %v1678 = vmax.f32 %v1614, 0.0
    %v1679 = vmax.f32 %v1615, 0.0
    %v1680 = vmax.f32 %v1616, 0.0
    %v1681 = vmax.f32 %v1617, 0.0
    %v1682 = vmax.f32 %v1618, 0.0
    %v1683 = vmax.f32 %v1619, 0.0
    %v1684 = vmax.f32 %v1620, 0.0
    %v1685 = vmax.f32 %v1621, 0.0
    %v1686 = vmax.f32 %v1622, 0.0
    %v1687 = vmax.f32 %v1623, 0.0
    %v1688 = vmax.f32 %v1624, 0.0
    %v1689 = vpack.c.bf16 %v1626, %v1625
    %v1690 = vpack.c.bf16 %v1628, %v1627
    %v1691 = vpack.c.bf16 %v1630, %v1629
    %v1692 = vpack.c.bf16 %v1632, %v1631
    %v1693 = vpack.c.bf16 %v1634, %v1633
    %v1694 = vpack.c.bf16 %v1636, %v1635
    %v1695 = vpack.c.bf16 %v1638, %v1637
    %v1696 = vpack.c.bf16 %v1640, %v1639
    %v1697 = vpack.c.bf16 %v1642, %v1641
    %v1698 = vpack.c.bf16 %v1644, %v1643
    %v1699 = vpack.c.bf16 %v1646, %v1645
    %v1700 = vpack.c.bf16 %v1648, %v1647
    %v1701 = vpack.c.bf16 %v1650, %v1649
    %v1702 = vpack.c.bf16 %v1652, %v1651
    %v1703 = vpack.c.bf16 %v1654, %v1653
    %v1704 = vpack.c.bf16 %v1656, %v1655
    %v1705 = vpack.c.bf16 %v1658, %v1657
    %v1706 = vpack.c.bf16 %v1660, %v1659
    %v1707 = vpack.c.bf16 %v1662, %v1661
    %v1708 = vpack.c.bf16 %v1664, %v1663
    %v1709 = vpack.c.bf16 %v1666, %v1665
    %v1710 = vpack.c.bf16 %v1668, %v1667
    %v1711 = vpack.c.bf16 %v1670, %v1669
    %v1712 = vpack.c.bf16 %v1672, %v1671
    %v1713 = vpack.c.bf16 %v1674, %v1673
    %v1714 = vpack.c.bf16 %v1676, %v1675
    %v1715 = vpack.c.bf16 %v1678, %v1677
    %v1716 = vpack.c.bf16 %v1680, %v1679
    %v1717 = vpack.c.bf16 %v1682, %v1681
    %v1718 = vpack.c.bf16 %v1684, %v1683
    %v1719 = vpack.c.bf16 %v1686, %v1685
    %v1720 = vpack.c.bf16 %v1688, %v1687
    %v1721 = vld [vmem:[%s3] sm:$0xff]
    %v1722 = vld [vmem:[%s3 + $0x8] sm:$0xff]
    %v1723 = vld [vmem:[%s3 + $0x10] sm:$0xff]
    %v1724 = vld [vmem:[%s3 + $0x18] sm:$0xff]
    %v1725 = vld [vmem:[%s3 + $0x20] sm:$0xff]
    %v1726 = vld [vmem:[%s3 + $0x28] sm:$0xff]
    %v1727 = vld [vmem:[%s3 + $0x30] sm:$0xff]
    %v1728 = vld [vmem:[%s3 + $0x38] sm:$0xff]
    %v1729 = vld [vmem:[%s3 + $0x40] sm:$0xff]
    %v1730 = vld [vmem:[%s3 + $0x48] sm:$0xff]
    %v1731 = vld [vmem:[%s3 + $0x50] sm:$0xff]
    %v1732 = vld [vmem:[%s3 + $0x58] sm:$0xff]
    %v1733 = vld [vmem:[%s3 + $0x60] sm:$0xff]
    %v1734 = vld [vmem:[%s3 + $0x68] sm:$0xff]
    %v1735 = vld [vmem:[%s3 + $0x70] sm:$0xff]
    %v1736 = vld [vmem:[%s3 + $0x78] sm:$0xff]
    %v1737 = vld [vmem:[%s3 + $0x80] sm:$0xff]
    %v1738 = vld [vmem:[%s3 + $0x88] sm:$0xff]
    %v1739 = vld [vmem:[%s3 + $0x90] sm:$0xff]
    %v1740 = vld [vmem:[%s3 + $0x98] sm:$0xff]
    %v1741 = vld [vmem:[%s3 + $0xa0] sm:$0xff]
    %v1742 = vld [vmem:[%s3 + $0xa8] sm:$0xff]
    %v1743 = vld [vmem:[%s3 + $0xb0] sm:$0xff]
    %v1744 = vld [vmem:[%s3 + $0xb8] sm:$0xff]
    %v1745 = vld [vmem:[%s3 + $0xc0] sm:$0xff]
    %v1746 = vld [vmem:[%s3 + $0xc8] sm:$0xff]
    %v1747 = vld [vmem:[%s3 + $0xd0] sm:$0xff]
    %v1748 = vld [vmem:[%s3 + $0xd8] sm:$0xff]
    %v1749 = vld [vmem:[%s3 + $0xe0] sm:$0xff]
    %v1750 = vld [vmem:[%s3 + $0xe8] sm:$0xff]
    %v1751 = vld [vmem:[%s3 + $0xf0] sm:$0xff]
    %v1752 = vld [vmem:[%s3 + $0xf8] sm:$0xff]
    %v1753 = vld [vmem:[%s3 + $0x100] sm:$0xff]
    %v1754 = vld [vmem:[%s3 + $0x108] sm:$0xff]
    %v1755 = vld [vmem:[%s3 + $0x110] sm:$0xff]
    %v1756 = vld [vmem:[%s3 + $0x118] sm:$0xff]
    %v1757 = vld [vmem:[%s3 + $0x120] sm:$0xff]
    %v1758 = vld [vmem:[%s3 + $0x128] sm:$0xff]
    %v1759 = vld [vmem:[%s3 + $0x130] sm:$0xff]
    %v1760 = vld [vmem:[%s3 + $0x138] sm:$0xff]
    %v1761 = vld [vmem:[%s3 + $0x140] sm:$0xff]
    %v1762 = vld [vmem:[%s3 + $0x148] sm:$0xff]
    %v1763 = vld [vmem:[%s3 + $0x150] sm:$0xff]
    %v1764 = vld [vmem:[%s3 + $0x158] sm:$0xff]
    %v1765 = vld [vmem:[%s3 + $0x160] sm:$0xff]
    %v1766 = vld [vmem:[%s3 + $0x168] sm:$0xff]
    %v1767 = vld [vmem:[%s3 + $0x170] sm:$0xff]
    %v1768 = vld [vmem:[%s3 + $0x178] sm:$0xff]
    %v1769 = vld [vmem:[%s3 + $0x180] sm:$0xff]
    %v1770 = vld [vmem:[%s3 + $0x188] sm:$0xff]
    %v1771 = vld [vmem:[%s3 + $0x190] sm:$0xff]
    %v1772 = vld [vmem:[%s3 + $0x198] sm:$0xff]
    %v1773 = vld [vmem:[%s3 + $0x1a0] sm:$0xff]
    %v1774 = vld [vmem:[%s3 + $0x1a8] sm:$0xff]
    %v1775 = vld [vmem:[%s3 + $0x1b0] sm:$0xff]
    %v1776 = vld [vmem:[%s3 + $0x1b8] sm:$0xff]
    %v1777 = vld [vmem:[%s3 + $0x1c0] sm:$0xff]
    %v1778 = vld [vmem:[%s3 + $0x1c8] sm:$0xff]
    %v1779 = vld [vmem:[%s3 + $0x1d0] sm:$0xff]
    %v1780 = vld [vmem:[%s3 + $0x1d8] sm:$0xff]
    %v1781 = vld [vmem:[%s3 + $0x1e0] sm:$0xff]
    %v1782 = vld [vmem:[%s3 + $0x1e8] sm:$0xff]
    %v1783 = vld [vmem:[%s3 + $0x1f0] sm:$0xff]
    %v1784 = vld [vmem:[%s3 + $0x1f8] sm:$0xff]
    %v1849 = vunpack.c.l.b16 %v1721
    %v1850 = vunpack.c.h.b16 %v1721
    %v1851 = vunpack.c.l.b16 %v1722
    %v1852 = vunpack.c.h.b16 %v1722
    %v1853 = vunpack.c.l.b16 %v1723
    %v1854 = vunpack.c.h.b16 %v1723
    %v1855 = vunpack.c.l.b16 %v1724
    %v1856 = vunpack.c.h.b16 %v1724
    %v1857 = vunpack.c.l.b16 %v1725
    %v1858 = vunpack.c.h.b16 %v1725
    %v1859 = vunpack.c.l.b16 %v1726
    %v1860 = vunpack.c.h.b16 %v1726
    %v1861 = vunpack.c.l.b16 %v1727
    %v1862 = vunpack.c.h.b16 %v1727
    %v1863 = vunpack.c.l.b16 %v1728
    %v1864 = vunpack.c.h.b16 %v1728
    %v1865 = vunpack.c.l.b16 %v1729
    %v1866 = vunpack.c.h.b16 %v1729
    %v1867 = vunpack.c.l.b16 %v1730
    %v1868 = vunpack.c.h.b16 %v1730
    %v1869 = vunpack.c.l.b16 %v1731
    %v1870 = vunpack.c.h.b16 %v1731
    %v1871 = vunpack.c.l.b16 %v1732
    %v1872 = vunpack.c.h.b16 %v1732
    %v1873 = vunpack.c.l.b16 %v1733
    %v1874 = vunpack.c.h.b16 %v1733
    %v1875 = vunpack.c.l.b16 %v1734
    %v1876 = vunpack.c.h.b16 %v1734
    %v1877 = vunpack.c.l.b16 %v1735
    %v1878 = vunpack.c.h.b16 %v1735
    %v1879 = vunpack.c.l.b16 %v1736
    %v1880 = vunpack.c.h.b16 %v1736
    %v1881 = vunpack.c.l.b16 %v1737
    %v1882 = vunpack.c.h.b16 %v1737
    %v1883 = vunpack.c.l.b16 %v1738
    %v1884 = vunpack.c.h.b16 %v1738
    %v1885 = vunpack.c.l.b16 %v1739
    %v1886 = vunpack.c.h.b16 %v1739
    %v1887 = vunpack.c.l.b16 %v1740
    %v1888 = vunpack.c.h.b16 %v1740
    %v1889 = vunpack.c.l.b16 %v1741
    %v1890 = vunpack.c.h.b16 %v1741
    %v1891 = vunpack.c.l.b16 %v1742
    %v1892 = vunpack.c.h.b16 %v1742
    %v1893 = vunpack.c.l.b16 %v1743
    %v1894 = vunpack.c.h.b16 %v1743
    %v1895 = vunpack.c.l.b16 %v1744
    %v1896 = vunpack.c.h.b16 %v1744
    %v1897 = vunpack.c.l.b16 %v1745
    %v1898 = vunpack.c.h.b16 %v1745
    %v1899 = vunpack.c.l.b16 %v1746
    %v1900 = vunpack.c.h.b16 %v1746
    %v1901 = vunpack.c.l.b16 %v1747
    %v1902 = vunpack.c.h.b16 %v1747
    %v1903 = vunpack.c.l.b16 %v1748
    %v1904 = vunpack.c.h.b16 %v1748
    %v1905 = vunpack.c.l.b16 %v1749
    %v1906 = vunpack.c.h.b16 %v1749
    %v1907 = vunpack.c.l.b16 %v1750
    %v1908 = vunpack.c.h.b16 %v1750
    %v1909 = vunpack.c.l.b16 %v1751
    %v1910 = vunpack.c.h.b16 %v1751
    %v1911 = vunpack.c.l.b16 %v1752
    %v1912 = vunpack.c.h.b16 %v1752
    %v1913 = vunpack.c.l.b16 %v1753
    %v1914 = vunpack.c.h.b16 %v1753
    %v1915 = vunpack.c.l.b16 %v1754
    %v1916 = vunpack.c.h.b16 %v1754
    %v1917 = vunpack.c.l.b16 %v1755
    %v1918 = vunpack.c.h.b16 %v1755
    %v1919 = vunpack.c.l.b16 %v1756
    %v1920 = vunpack.c.h.b16 %v1756
    %v1921 = vunpack.c.l.b16 %v1757
    %v1922 = vunpack.c.h.b16 %v1757
    %v1923 = vunpack.c.l.b16 %v1758
    %v1924 = vunpack.c.h.b16 %v1758
    %v1925 = vunpack.c.l.b16 %v1759
    %v1926 = vunpack.c.h.b16 %v1759
    %v1927 = vunpack.c.l.b16 %v1760
    %v1928 = vunpack.c.h.b16 %v1760
    %v1929 = vunpack.c.l.b16 %v1761
    %v1930 = vunpack.c.h.b16 %v1761
    %v1931 = vunpack.c.l.b16 %v1762
    %v1932 = vunpack.c.h.b16 %v1762
    %v1933 = vunpack.c.l.b16 %v1763
    %v1934 = vunpack.c.h.b16 %v1763
    %v1935 = vunpack.c.l.b16 %v1764
    %v1936 = vunpack.c.h.b16 %v1764
    %v1937 = vunpack.c.l.b16 %v1765
    %v1938 = vunpack.c.h.b16 %v1765
    %v1939 = vunpack.c.l.b16 %v1766
    %v1940 = vunpack.c.h.b16 %v1766
    %v1941 = vunpack.c.l.b16 %v1767
    %v1942 = vunpack.c.h.b16 %v1767
    %v1943 = vunpack.c.l.b16 %v1768
    %v1944 = vunpack.c.h.b16 %v1768
    %v1945 = vunpack.c.l.b16 %v1769
    %v1946 = vunpack.c.h.b16 %v1769
    %v1947 = vunpack.c.l.b16 %v1770
    %v1948 = vunpack.c.h.b16 %v1770
    %v1949 = vunpack.c.l.b16 %v1771
    %v1950 = vunpack.c.h.b16 %v1771
    %v1951 = vunpack.c.l.b16 %v1772
    %v1952 = vunpack.c.h.b16 %v1772
    %v1953 = vunpack.c.l.b16 %v1773
    %v1954 = vunpack.c.h.b16 %v1773
    %v1955 = vunpack.c.l.b16 %v1774
    %v1956 = vunpack.c.h.b16 %v1774
    %v1957 = vunpack.c.l.b16 %v1775
    %v1958 = vunpack.c.h.b16 %v1775
    %v1959 = vunpack.c.l.b16 %v1776
    %v1960 = vunpack.c.h.b16 %v1776
    %v1961 = vunpack.c.l.b16 %v1777
    %v1962 = vunpack.c.h.b16 %v1777
    %v1963 = vunpack.c.l.b16 %v1778
    %v1964 = vunpack.c.h.b16 %v1778
    %v1965 = vunpack.c.l.b16 %v1779
    %v1966 = vunpack.c.h.b16 %v1779
    %v1967 = vunpack.c.l.b16 %v1780
    %v1968 = vunpack.c.h.b16 %v1780
    %v1969 = vunpack.c.l.b16 %v1781
    %v1970 = vunpack.c.h.b16 %v1781
    %v1971 = vunpack.c.l.b16 %v1782
    %v1972 = vunpack.c.h.b16 %v1782
    %v1973 = vunpack.c.l.b16 %v1783
    %v1974 = vunpack.c.h.b16 %v1783
    %v1975 = vunpack.c.l.b16 %v1784
    %v1976 = vunpack.c.h.b16 %v1784
    %v1977 = vpack.c.b16 %v1853, %v1849
    %v1978 = vpack.c.b16 %v1854, %v1850
    %v1979 = vpack.c.b16 %v1855, %v1851
    %v1980 = vpack.c.b16 %v1856, %v1852
    %v1981 = vpack.c.b16 %v1861, %v1857
    %v1982 = vpack.c.b16 %v1862, %v1858
    %v1983 = vpack.c.b16 %v1863, %v1859
    %v1984 = vpack.c.b16 %v1864, %v1860
    %v1985 = vpack.c.b16 %v1869, %v1865
    %v1986 = vpack.c.b16 %v1870, %v1866
    %v1987 = vpack.c.b16 %v1871, %v1867
    %v1988 = vpack.c.b16 %v1872, %v1868
    %v1989 = vpack.c.b16 %v1877, %v1873
    %v1990 = vpack.c.b16 %v1878, %v1874
    %v1991 = vpack.c.b16 %v1879, %v1875
    %v1992 = vpack.c.b16 %v1880, %v1876
    %v1993 = vpack.c.b16 %v1885, %v1881
    %v1994 = vpack.c.b16 %v1886, %v1882
    %v1995 = vpack.c.b16 %v1887, %v1883
    %v1996 = vpack.c.b16 %v1888, %v1884
    %v1997 = vpack.c.b16 %v1893, %v1889
    %v1998 = vpack.c.b16 %v1894, %v1890
    %v1999 = vpack.c.b16 %v1895, %v1891
    %v2000 = vpack.c.b16 %v1896, %v1892
    %v2001 = vpack.c.b16 %v1901, %v1897
    %v2002 = vpack.c.b16 %v1902, %v1898
    %v2003 = vpack.c.b16 %v1903, %v1899
    %v2004 = vpack.c.b16 %v1904, %v1900
    %v2005 = vpack.c.b16 %v1909, %v1905
    %v2006 = vpack.c.b16 %v1910, %v1906
    %v2007 = vpack.c.b16 %v1911, %v1907
    %v2008 = vpack.c.b16 %v1912, %v1908
    %v2009 = vpack.c.b16 %v1917, %v1913
    %v2010 = vpack.c.b16 %v1918, %v1914
    %v2011 = vpack.c.b16 %v1919, %v1915
    %v2012 = vpack.c.b16 %v1920, %v1916
    %v2013 = vpack.c.b16 %v1925, %v1921
    %v2014 = vpack.c.b16 %v1926, %v1922
    %v2015 = vpack.c.b16 %v1927, %v1923
    %v2016 = vpack.c.b16 %v1928, %v1924
    %v2017 = vpack.c.b16 %v1933, %v1929
    %v2018 = vpack.c.b16 %v1934, %v1930
    %v2019 = vpack.c.b16 %v1935, %v1931
    %v2020 = vpack.c.b16 %v1936, %v1932
    %v2021 = vpack.c.b16 %v1941, %v1937
    %v2022 = vpack.c.b16 %v1942, %v1938
    %v2023 = vpack.c.b16 %v1943, %v1939
    %v2024 = vpack.c.b16 %v1944, %v1940
    %v2025 = vpack.c.b16 %v1949, %v1945
    %v2026 = vpack.c.b16 %v1950, %v1946
    %v2027 = vpack.c.b16 %v1951, %v1947
    %v2028 = vpack.c.b16 %v1952, %v1948
    %v2029 = vpack.c.b16 %v1957, %v1953
    %v2030 = vpack.c.b16 %v1958, %v1954
    %v2031 = vpack.c.b16 %v1959, %v1955
    %v2032 = vpack.c.b16 %v1960, %v1956
    %v2033 = vpack.c.b16 %v1965, %v1961
    %v2034 = vpack.c.b16 %v1966, %v1962
    %v2035 = vpack.c.b16 %v1967, %v1963
    %v2036 = vpack.c.b16 %v1968, %v1964
    %v2037 = vpack.c.b16 %v1973, %v1969
    %v2038 = vpack.c.b16 %v1974, %v1970
    %v2039 = vpack.c.b16 %v1975, %v1971
    %v2040 = vpack.c.b16 %v1976, %v1972
    %2105 = vmatpush.bf16.msra.mxu0 %v1696
    %2106 = vmatpush.bf16.msra.mxu0 %v1695
    %2107 = vmatpush.bf16.msra.mxu0 %v1694
    %2108 = vmatpush.bf16.msra.mxu0 %v1693
    %2109 = vmatpush.bf16.msra.mxu0 %v1692
    %2110 = vmatpush.bf16.msra.mxu0 %v1691
    %2111 = vmatpush.bf16.msra.mxu0 %v1690
    %2112 = vmatpush.bf16.msra.mxu0 %v1689
    %2113 = vmatmul.bf16.gmra.mxu0 %v1977
    %v2114 = vpop.f32.mrf.mxu0
    %v2115 = vadd.f32 0.0, %v2114
    %v2116 = vpop.f32.mrf.mxu0
    %v2117 = vadd.f32 0.0, %v2116
    %2118 = vmatmul.bf16.gmra.mxu0 %v1981
    %v2119 = vpop.f32.mrf.mxu0
    %v2120 = vadd.f32 0.0, %v2119
    %v2121 = vpop.f32.mrf.mxu0
    %v2122 = vadd.f32 0.0, %v2121
    %2123 = vmatmul.bf16.gmra.mxu0 %v1985
    %v2124 = vpop.f32.mrf.mxu0
    %v2125 = vadd.f32 0.0, %v2124
    %v2126 = vpop.f32.mrf.mxu0
    %v2127 = vadd.f32 0.0, %v2126
    %2128 = vmatmul.bf16.gmra.mxu0 %v1989
    %v2129 = vpop.f32.mrf.mxu0
    %v2130 = vadd.f32 0.0, %v2129
    %v2131 = vpop.f32.mrf.mxu0
    %v2132 = vadd.f32 0.0, %v2131
    %2133 = vmatmul.bf16.gmra.mxu0 %v1993
    %v2134 = vpop.f32.mrf.mxu0
    %v2135 = vadd.f32 0.0, %v2134
    %v2136 = vpop.f32.mrf.mxu0
    %v2137 = vadd.f32 0.0, %v2136
    %2138 = vmatmul.bf16.gmra.mxu0 %v1997
    %v2139 = vpop.f32.mrf.mxu0
    %v2140 = vadd.f32 0.0, %v2139
    %v2141 = vpop.f32.mrf.mxu0
    %v2142 = vadd.f32 0.0, %v2141
    %2143 = vmatmul.bf16.gmra.mxu0 %v2001
    %v2144 = vpop.f32.mrf.mxu0
    %v2145 = vadd.f32 0.0, %v2144
    %v2146 = vpop.f32.mrf.mxu0
    %v2147 = vadd.f32 0.0, %v2146
    %2148 = vmatmul.bf16.gmra.mxu0 %v2005
    %v2149 = vpop.f32.mrf.mxu0
    %v2150 = vadd.f32 0.0, %v2149
    %v2151 = vpop.f32.mrf.mxu0
    %v2152 = vadd.f32 0.0, %v2151
    %2153 = vmatmul.bf16.gmra.mxu0 %v2009
    %v2154 = vpop.f32.mrf.mxu0
    %v2155 = vadd.f32 0.0, %v2154
    %v2156 = vpop.f32.mrf.mxu0
    %v2157 = vadd.f32 0.0, %v2156
    %2158 = vmatmul.bf16.gmra.mxu0 %v2013
    %v2159 = vpop.f32.mrf.mxu0
    %v2160 = vadd.f32 0.0, %v2159
    %v2161 = vpop.f32.mrf.mxu0
    %v2162 = vadd.f32 0.0, %v2161
    %2163 = vmatmul.bf16.gmra.mxu0 %v2017
    %v2164 = vpop.f32.mrf.mxu0
    %v2165 = vadd.f32 0.0, %v2164
    %v2166 = vpop.f32.mrf.mxu0
    %v2167 = vadd.f32 0.0, %v2166
    %2168 = vmatmul.bf16.gmra.mxu0 %v2021
    %v2169 = vpop.f32.mrf.mxu0
    %v2170 = vadd.f32 0.0, %v2169
    %v2171 = vpop.f32.mrf.mxu0
    %v2172 = vadd.f32 0.0, %v2171
    %2173 = vmatmul.bf16.gmra.mxu0 %v2025
    %v2174 = vpop.f32.mrf.mxu0
    %v2175 = vadd.f32 0.0, %v2174
    %v2176 = vpop.f32.mrf.mxu0
    %v2177 = vadd.f32 0.0, %v2176
    %2178 = vmatmul.bf16.gmra.mxu0 %v2029
    %v2179 = vpop.f32.mrf.mxu0
    %v2180 = vadd.f32 0.0, %v2179
    %v2181 = vpop.f32.mrf.mxu0
    %v2182 = vadd.f32 0.0, %v2181
    %2183 = vmatmul.bf16.gmra.mxu0 %v2033
    %v2184 = vpop.f32.mrf.mxu0
    %v2185 = vadd.f32 0.0, %v2184
    %v2186 = vpop.f32.mrf.mxu0
    %v2187 = vadd.f32 0.0, %v2186
    %2188 = vmatmul.bf16.gmra.mxu0 %v2037
    %v2189 = vpop.f32.mrf.mxu0
    %v2190 = vadd.f32 0.0, %v2189
    %v2191 = vpop.f32.mrf.mxu0
    %v2192 = vadd.f32 0.0, %v2191
    %2193 = vdwg.mxu0
    %2194 = vmatpush.bf16.msra.mxu0 %v1704
    %2195 = vmatpush.bf16.msra.mxu0 %v1703
    %2196 = vmatpush.bf16.msra.mxu0 %v1702
    %2197 = vmatpush.bf16.msra.mxu0 %v1701
    %2198 = vmatpush.bf16.msra.mxu0 %v1700
    %2199 = vmatpush.bf16.msra.mxu0 %v1699
    %2200 = vmatpush.bf16.msra.mxu0 %v1698
    %2201 = vmatpush.bf16.msra.mxu0 %v1697
    %2202 = vmatmul.bf16.gmra.mxu0 %v1978
    %v2203 = vpop.f32.mrf.mxu0
    %v2204 = vadd.f32 %v2115, %v2203
    %v2205 = vpop.f32.mrf.mxu0
    %v2206 = vadd.f32 %v2117, %v2205
    %2207 = vmatmul.bf16.gmra.mxu0 %v1982
    %v2208 = vpop.f32.mrf.mxu0
    %v2209 = vadd.f32 %v2120, %v2208
    %v2210 = vpop.f32.mrf.mxu0
    %v2211 = vadd.f32 %v2122, %v2210
    %2212 = vmatmul.bf16.gmra.mxu0 %v1986
    %v2213 = vpop.f32.mrf.mxu0
    %v2214 = vadd.f32 %v2125, %v2213
    %v2215 = vpop.f32.mrf.mxu0
    %v2216 = vadd.f32 %v2127, %v2215
    %2217 = vmatmul.bf16.gmra.mxu0 %v1990
    %v2218 = vpop.f32.mrf.mxu0
    %v2219 = vadd.f32 %v2130, %v2218
    %v2220 = vpop.f32.mrf.mxu0
    %v2221 = vadd.f32 %v2132, %v2220
    %2222 = vmatmul.bf16.gmra.mxu0 %v1994
    %v2223 = vpop.f32.mrf.mxu0
    %v2224 = vadd.f32 %v2135, %v2223
    %v2225 = vpop.f32.mrf.mxu0
    %v2226 = vadd.f32 %v2137, %v2225
    %2227 = vmatmul.bf16.gmra.mxu0 %v1998
    %v2228 = vpop.f32.mrf.mxu0
    %v2229 = vadd.f32 %v2140, %v2228
    %v2230 = vpop.f32.mrf.mxu0
    %v2231 = vadd.f32 %v2142, %v2230
    %2232 = vmatmul.bf16.gmra.mxu0 %v2002
    %v2233 = vpop.f32.mrf.mxu0
    %v2234 = vadd.f32 %v2145, %v2233
    %v2235 = vpop.f32.mrf.mxu0
    %v2236 = vadd.f32 %v2147, %v2235
    %2237 = vmatmul.bf16.gmra.mxu0 %v2006
    %v2238 = vpop.f32.mrf.mxu0
    %v2239 = vadd.f32 %v2150, %v2238
    %v2240 = vpop.f32.mrf.mxu0
    %v2241 = vadd.f32 %v2152, %v2240
    %2242 = vmatmul.bf16.gmra.mxu0 %v2010
    %v2243 = vpop.f32.mrf.mxu0
    %v2244 = vadd.f32 %v2155, %v2243
    %v2245 = vpop.f32.mrf.mxu0
    %v2246 = vadd.f32 %v2157, %v2245
    %2247 = vmatmul.bf16.gmra.mxu0 %v2014
    %v2248 = vpop.f32.mrf.mxu0
    %v2249 = vadd.f32 %v2160, %v2248
    %v2250 = vpop.f32.mrf.mxu0
    %v2251 = vadd.f32 %v2162, %v2250
    %2252 = vmatmul.bf16.gmra.mxu0 %v2018
    %v2253 = vpop.f32.mrf.mxu0
    %v2254 = vadd.f32 %v2165, %v2253
    %v2255 = vpop.f32.mrf.mxu0
    %v2256 = vadd.f32 %v2167, %v2255
    %2257 = vmatmul.bf16.gmra.mxu0 %v2022
    %v2258 = vpop.f32.mrf.mxu0
    %v2259 = vadd.f32 %v2170, %v2258
    %v2260 = vpop.f32.mrf.mxu0
    %v2261 = vadd.f32 %v2172, %v2260
    %2262 = vmatmul.bf16.gmra.mxu0 %v2026
    %v2263 = vpop.f32.mrf.mxu0
    %v2264 = vadd.f32 %v2175, %v2263
    %v2265 = vpop.f32.mrf.mxu0
    %v2266 = vadd.f32 %v2177, %v2265
    %2267 = vmatmul.bf16.gmra.mxu0 %v2030
    %v2268 = vpop.f32.mrf.mxu0
    %v2269 = vadd.f32 %v2180, %v2268
    %v2270 = vpop.f32.mrf.mxu0
    %v2271 = vadd.f32 %v2182, %v2270
    %2272 = vmatmul.bf16.gmra.mxu0 %v2034
    %v2273 = vpop.f32.mrf.mxu0
    %v2274 = vadd.f32 %v2185, %v2273
    %v2275 = vpop.f32.mrf.mxu0
    %v2276 = vadd.f32 %v2187, %v2275
    %2277 = vmatmul.bf16.gmra.mxu0 %v2038
    %v2278 = vpop.f32.mrf.mxu0
    %v2279 = vadd.f32 %v2190, %v2278
    %v2280 = vpop.f32.mrf.mxu0
    %v2281 = vadd.f32 %v2192, %v2280
    %2282 = vdwg.mxu0
    %2283 = vmatpush.bf16.msra.mxu0 %v1712
    %2284 = vmatpush.bf16.msra.mxu0 %v1711
    %2285 = vmatpush.bf16.msra.mxu0 %v1710
    %2286 = vmatpush.bf16.msra.mxu0 %v1709
    %2287 = vmatpush.bf16.msra.mxu0 %v1708
    %2288 = vmatpush.bf16.msra.mxu0 %v1707
    %2289 = vmatpush.bf16.msra.mxu0 %v1706
    %2290 = vmatpush.bf16.msra.mxu0 %v1705
    %2291 = vmatmul.bf16.gmra.mxu0 %v1979
    %v2292 = vpop.f32.mrf.mxu0
    %v2293 = vadd.f32 %v2204, %v2292
    %v2294 = vpop.f32.mrf.mxu0
    %v2295 = vadd.f32 %v2206, %v2294
    %2296 = vmatmul.bf16.gmra.mxu0 %v1983
    %v2297 = vpop.f32.mrf.mxu0
    %v2298 = vadd.f32 %v2209, %v2297
    %v2299 = vpop.f32.mrf.mxu0
    %v2300 = vadd.f32 %v2211, %v2299
    %2301 = vmatmul.bf16.gmra.mxu0 %v1987
    %v2302 = vpop.f32.mrf.mxu0
    %v2303 = vadd.f32 %v2214, %v2302
    %v2304 = vpop.f32.mrf.mxu0
    %v2305 = vadd.f32 %v2216, %v2304
    %2306 = vmatmul.bf16.gmra.mxu0 %v1991
    %v2307 = vpop.f32.mrf.mxu0
    %v2308 = vadd.f32 %v2219, %v2307
    %v2309 = vpop.f32.mrf.mxu0
    %v2310 = vadd.f32 %v2221, %v2309
    %2311 = vmatmul.bf16.gmra.mxu0 %v1995
    %v2312 = vpop.f32.mrf.mxu0
    %v2313 = vadd.f32 %v2224, %v2312
    %v2314 = vpop.f32.mrf.mxu0
    %v2315 = vadd.f32 %v2226, %v2314
    %2316 = vmatmul.bf16.gmra.mxu0 %v1999
    %v2317 = vpop.f32.mrf.mxu0
    %v2318 = vadd.f32 %v2229, %v2317
    %v2319 = vpop.f32.mrf.mxu0
    %v2320 = vadd.f32 %v2231, %v2319
    %2321 = vmatmul.bf16.gmra.mxu0 %v2003
    %v2322 = vpop.f32.mrf.mxu0
    %v2323 = vadd.f32 %v2234, %v2322
    %v2324 = vpop.f32.mrf.mxu0
    %v2325 = vadd.f32 %v2236, %v2324
    %2326 = vmatmul.bf16.gmra.mxu0 %v2007
    %v2327 = vpop.f32.mrf.mxu0
    %v2328 = vadd.f32 %v2239, %v2327
    %v2329 = vpop.f32.mrf.mxu0
    %v2330 = vadd.f32 %v2241, %v2329
    %2331 = vmatmul.bf16.gmra.mxu0 %v2011
    %v2332 = vpop.f32.mrf.mxu0
    %v2333 = vadd.f32 %v2244, %v2332
    %v2334 = vpop.f32.mrf.mxu0
    %v2335 = vadd.f32 %v2246, %v2334
    %2336 = vmatmul.bf16.gmra.mxu0 %v2015
    %v2337 = vpop.f32.mrf.mxu0
    %v2338 = vadd.f32 %v2249, %v2337
    %v2339 = vpop.f32.mrf.mxu0
    %v2340 = vadd.f32 %v2251, %v2339
    %2341 = vmatmul.bf16.gmra.mxu0 %v2019
    %v2342 = vpop.f32.mrf.mxu0
    %v2343 = vadd.f32 %v2254, %v2342
    %v2344 = vpop.f32.mrf.mxu0
    %v2345 = vadd.f32 %v2256, %v2344
    %2346 = vmatmul.bf16.gmra.mxu0 %v2023
    %v2347 = vpop.f32.mrf.mxu0
    %v2348 = vadd.f32 %v2259, %v2347
    %v2349 = vpop.f32.mrf.mxu0
    %v2350 = vadd.f32 %v2261, %v2349
    %2351 = vmatmul.bf16.gmra.mxu0 %v2027
    %v2352 = vpop.f32.mrf.mxu0
    %v2353 = vadd.f32 %v2264, %v2352
    %v2354 = vpop.f32.mrf.mxu0
    %v2355 = vadd.f32 %v2266, %v2354
    %2356 = vmatmul.bf16.gmra.mxu0 %v2031
    %v2357 = vpop.f32.mrf.mxu0
    %v2358 = vadd.f32 %v2269, %v2357
    %v2359 = vpop.f32.mrf.mxu0
    %v2360 = vadd.f32 %v2271, %v2359
    %2361 = vmatmul.bf16.gmra.mxu0 %v2035
    %v2362 = vpop.f32.mrf.mxu0
    %v2363 = vadd.f32 %v2274, %v2362
    %v2364 = vpop.f32.mrf.mxu0
    %v2365 = vadd.f32 %v2276, %v2364
    %2366 = vmatmul.bf16.gmra.mxu0 %v2039
    %v2367 = vpop.f32.mrf.mxu0
    %v2368 = vadd.f32 %v2279, %v2367
    %v2369 = vpop.f32.mrf.mxu0
    %v2370 = vadd.f32 %v2281, %v2369
    %2371 = vdwg.mxu0
    %2372 = vmatpush.bf16.msra.mxu0 %v1720
    %2373 = vmatpush.bf16.msra.mxu0 %v1719
    %2374 = vmatpush.bf16.msra.mxu0 %v1718
    %2375 = vmatpush.bf16.msra.mxu0 %v1717
    %2376 = vmatpush.bf16.msra.mxu0 %v1716
    %2377 = vmatpush.bf16.msra.mxu0 %v1715
    %2378 = vmatpush.bf16.msra.mxu0 %v1714
    %2379 = vmatpush.bf16.msra.mxu0 %v1713
    %2380 = vmatmul.bf16.gmra.mxu0 %v1980
    %v2381 = vpop.f32.mrf.mxu0
    %v2382 = vadd.f32 %v2293, %v2381
    %v2383 = vpop.f32.mrf.mxu0
    %v2384 = vadd.f32 %v2295, %v2383
    %2385 = vmatmul.bf16.gmra.mxu0 %v1984
    %v2386 = vpop.f32.mrf.mxu0
    %v2387 = vadd.f32 %v2298, %v2386
    %v2388 = vpop.f32.mrf.mxu0
    %v2389 = vadd.f32 %v2300, %v2388
    %2390 = vmatmul.bf16.gmra.mxu0 %v1988
    %v2391 = vpop.f32.mrf.mxu0
    %v2392 = vadd.f32 %v2303, %v2391
    %v2393 = vpop.f32.mrf.mxu0
    %v2394 = vadd.f32 %v2305, %v2393
    %2395 = vmatmul.bf16.gmra.mxu0 %v1992
    %v2396 = vpop.f32.mrf.mxu0
    %v2397 = vadd.f32 %v2308, %v2396
    %v2398 = vpop.f32.mrf.mxu0
    %v2399 = vadd.f32 %v2310, %v2398
    %2400 = vmatmul.bf16.gmra.mxu0 %v1996
    %v2401 = vpop.f32.mrf.mxu0
    %v2402 = vadd.f32 %v2313, %v2401
    %v2403 = vpop.f32.mrf.mxu0
    %v2404 = vadd.f32 %v2315, %v2403
    %2405 = vmatmul.bf16.gmra.mxu0 %v2000
    %v2406 = vpop.f32.mrf.mxu0
    %v2407 = vadd.f32 %v2318, %v2406
    %v2408 = vpop.f32.mrf.mxu0
    %v2409 = vadd.f32 %v2320, %v2408
    %2410 = vmatmul.bf16.gmra.mxu0 %v2004
    %v2411 = vpop.f32.mrf.mxu0
    %v2412 = vadd.f32 %v2323, %v2411
    %v2413 = vpop.f32.mrf.mxu0
    %v2414 = vadd.f32 %v2325, %v2413
    %2415 = vmatmul.bf16.gmra.mxu0 %v2008
    %v2416 = vpop.f32.mrf.mxu0
    %v2417 = vadd.f32 %v2328, %v2416
    %v2418 = vpop.f32.mrf.mxu0
    %v2419 = vadd.f32 %v2330, %v2418
    %2420 = vmatmul.bf16.gmra.mxu0 %v2012
    %v2421 = vpop.f32.mrf.mxu0
    %v2422 = vadd.f32 %v2333, %v2421
    %v2423 = vpop.f32.mrf.mxu0
    %v2424 = vadd.f32 %v2335, %v2423
    %2425 = vmatmul.bf16.gmra.mxu0 %v2016
    %v2426 = vpop.f32.mrf.mxu0
    %v2427 = vadd.f32 %v2338, %v2426
    %v2428 = vpop.f32.mrf.mxu0
    %v2429 = vadd.f32 %v2340, %v2428
    %2430 = vmatmul.bf16.gmra.mxu0 %v2020
    %v2431 = vpop.f32.mrf.mxu0
    %v2432 = vadd.f32 %v2343, %v2431
    %v2433 = vpop.f32.mrf.mxu0
    %v2434 = vadd.f32 %v2345, %v2433
    %2435 = vmatmul.bf16.gmra.mxu0 %v2024
    %v2436 = vpop.f32.mrf.mxu0
    %v2437 = vadd.f32 %v2348, %v2436
    %v2438 = vpop.f32.mrf.mxu0
    %v2439 = vadd.f32 %v2350, %v2438
    %2440 = vmatmul.bf16.gmra.mxu0 %v2028
    %v2441 = vpop.f32.mrf.mxu0
    %v2442 = vadd.f32 %v2353, %v2441
    %v2443 = vpop.f32.mrf.mxu0
    %v2444 = vadd.f32 %v2355, %v2443
    %2445 = vmatmul.bf16.gmra.mxu0 %v2032
    %v2446 = vpop.f32.mrf.mxu0
    %v2447 = vadd.f32 %v2358, %v2446
    %v2448 = vpop.f32.mrf.mxu0
    %v2449 = vadd.f32 %v2360, %v2448
    %2450 = vmatmul.bf16.gmra.mxu0 %v2036
    %v2451 = vpop.f32.mrf.mxu0
    %v2452 = vadd.f32 %v2363, %v2451
    %v2453 = vpop.f32.mrf.mxu0
    %v2454 = vadd.f32 %v2365, %v2453
    %2455 = vmatmul.bf16.gmra.mxu0 %v2040
    %v2456 = vpop.f32.mrf.mxu0
    %v2457 = vadd.f32 %v2368, %v2456
    %v2458 = vpop.f32.mrf.mxu0
    %v2459 = vadd.f32 %v2370, %v2458
    %2460 = vdwg.mxu0
    %v2461 = vpack.c.bf16 %v2382, %v2382
    %v2462 = vpack.c.bf16 %v2384, %v2384
    %v2463 = vpack.c.bf16 %v2387, %v2387
    %v2464 = vpack.c.bf16 %v2389, %v2389
    %v2465 = vpack.c.bf16 %v2392, %v2392
    %v2466 = vpack.c.bf16 %v2394, %v2394
    %v2467 = vpack.c.bf16 %v2397, %v2397
    %v2468 = vpack.c.bf16 %v2399, %v2399
    %v2469 = vpack.c.bf16 %v2402, %v2402
    %v2470 = vpack.c.bf16 %v2404, %v2404
    %v2471 = vpack.c.bf16 %v2407, %v2407
    %v2472 = vpack.c.bf16 %v2409, %v2409
    %v2473 = vpack.c.bf16 %v2412, %v2412
    %v2474 = vpack.c.bf16 %v2414, %v2414
    %v2475 = vpack.c.bf16 %v2417, %v2417
    %v2476 = vpack.c.bf16 %v2419, %v2419
    %v2477 = vpack.c.bf16 %v2422, %v2422
    %v2478 = vpack.c.bf16 %v2424, %v2424
    %v2479 = vpack.c.bf16 %v2427, %v2427
    %v2480 = vpack.c.bf16 %v2429, %v2429
    %v2481 = vpack.c.bf16 %v2432, %v2432
    %v2482 = vpack.c.bf16 %v2434, %v2434
    %v2483 = vpack.c.bf16 %v2437, %v2437
    %v2484 = vpack.c.bf16 %v2439, %v2439
    %v2485 = vpack.c.bf16 %v2442, %v2442
    %v2486 = vpack.c.bf16 %v2444, %v2444
    %v2487 = vpack.c.bf16 %v2447, %v2447
    %v2488 = vpack.c.bf16 %v2449, %v2449
    %v2489 = vpack.c.bf16 %v2452, %v2452
    %v2490 = vpack.c.bf16 %v2454, %v2454
    %v2491 = vpack.c.bf16 %v2457, %v2457
    %v2492 = vpack.c.bf16 %v2459, %v2459
    %v2493 = vld [vmem:[%s4] sm:$0xff]
    %v2494 = vld [vmem:[%s4 + $0x8] sm:$0xff]
    %v2495 = vld [vmem:[%s4 + $0x10] sm:$0xff]
    %v2496 = vld [vmem:[%s4 + $0x18] sm:$0xff]
    %v2497 = vld [vmem:[%s4 + $0x20] sm:$0xff]
    %v2498 = vld [vmem:[%s4 + $0x28] sm:$0xff]
    %v2499 = vld [vmem:[%s4 + $0x30] sm:$0xff]
    %v2500 = vld [vmem:[%s4 + $0x38] sm:$0xff]
    %v2501 = vld [vmem:[%s4 + $0x40] sm:$0xff]
    %v2502 = vld [vmem:[%s4 + $0x48] sm:$0xff]
    %v2503 = vld [vmem:[%s4 + $0x50] sm:$0xff]
    %v2504 = vld [vmem:[%s4 + $0x58] sm:$0xff]
    %v2505 = vld [vmem:[%s4 + $0x60] sm:$0xff]
    %v2506 = vld [vmem:[%s4 + $0x68] sm:$0xff]
    %v2507 = vld [vmem:[%s4 + $0x70] sm:$0xff]
    %v2508 = vld [vmem:[%s4 + $0x78] sm:$0xff]
    %v2509 = vld [vmem:[%s4 + $0x80] sm:$0xff]
    %v2510 = vld [vmem:[%s4 + $0x88] sm:$0xff]
    %v2511 = vld [vmem:[%s4 + $0x90] sm:$0xff]
    %v2512 = vld [vmem:[%s4 + $0x98] sm:$0xff]
    %v2513 = vld [vmem:[%s4 + $0xa0] sm:$0xff]
    %v2514 = vld [vmem:[%s4 + $0xa8] sm:$0xff]
    %v2515 = vld [vmem:[%s4 + $0xb0] sm:$0xff]
    %v2516 = vld [vmem:[%s4 + $0xb8] sm:$0xff]
    %v2517 = vld [vmem:[%s4 + $0xc0] sm:$0xff]
    %v2518 = vld [vmem:[%s4 + $0xc8] sm:$0xff]
    %v2519 = vld [vmem:[%s4 + $0xd0] sm:$0xff]
    %v2520 = vld [vmem:[%s4 + $0xd8] sm:$0xff]
    %v2521 = vld [vmem:[%s4 + $0xe0] sm:$0xff]
    %v2522 = vld [vmem:[%s4 + $0xe8] sm:$0xff]
    %v2523 = vld [vmem:[%s4 + $0xf0] sm:$0xff]
    %v2524 = vld [vmem:[%s4 + $0xf8] sm:$0xff]
    %v2525 = vpack.c.bf16 %v2493, %v2493
    %v2526 = vpack.c.bf16 %v2494, %v2494
    %v2527 = vpack.c.bf16 %v2495, %v2495
    %v2528 = vpack.c.bf16 %v2496, %v2496
    %v2529 = vpack.c.bf16 %v2497, %v2497
    %v2530 = vpack.c.bf16 %v2498, %v2498
    %v2531 = vpack.c.bf16 %v2499, %v2499
    %v2532 = vpack.c.bf16 %v2500, %v2500
    %v2533 = vpack.c.bf16 %v2501, %v2501
    %v2534 = vpack.c.bf16 %v2502, %v2502
    %v2535 = vpack.c.bf16 %v2503, %v2503
    %v2536 = vpack.c.bf16 %v2504, %v2504
    %v2537 = vpack.c.bf16 %v2505, %v2505
    %v2538 = vpack.c.bf16 %v2506, %v2506
    %v2539 = vpack.c.bf16 %v2507, %v2507
    %v2540 = vpack.c.bf16 %v2508, %v2508
    %v2541 = vpack.c.bf16 %v2509, %v2509
    %v2542 = vpack.c.bf16 %v2510, %v2510
    %v2543 = vpack.c.bf16 %v2511, %v2511
    %v2544 = vpack.c.bf16 %v2512, %v2512
    %v2545 = vpack.c.bf16 %v2513, %v2513
    %v2546 = vpack.c.bf16 %v2514, %v2514
    %v2547 = vpack.c.bf16 %v2515, %v2515
    %v2548 = vpack.c.bf16 %v2516, %v2516
    %v2549 = vpack.c.bf16 %v2517, %v2517
    %v2550 = vpack.c.bf16 %v2518, %v2518
    %v2551 = vpack.c.bf16 %v2519, %v2519
    %v2552 = vpack.c.bf16 %v2520, %v2520
    %v2553 = vpack.c.bf16 %v2521, %v2521
    %v2554 = vpack.c.bf16 %v2522, %v2522
    %v2555 = vpack.c.bf16 %v2523, %v2523
    %v2556 = vpack.c.bf16 %v2524, %v2524
    %2558 = vset.pattern.permute.xlu0 0
    %2559 = vperm.xlu0 %2558, %v2525
    %v2560 = vpop.permute.xlu0 %2559
    %v2563 = vunpack.c.l.s4 839922192
    %v2564 = vunpack.c.0.s8 %v2563
    %v2565 = vperm.slane %v2560, %v2564
    %2567 = vset.pattern.permute.xlu0 0
    %2568 = vperm.xlu0 %2567, %v2526
    %v2569 = vpop.permute.xlu0 %2568
    %v2572 = vunpack.c.l.s4 839922192
    %v2573 = vunpack.c.0.s8 %v2572
    %v2574 = vperm.slane %v2569, %v2573
    %2576 = vset.pattern.permute.xlu0 0
    %2577 = vperm.xlu0 %2576, %v2527
    %v2578 = vpop.permute.xlu0 %2577
    %v2581 = vunpack.c.l.s4 839922192
    %v2582 = vunpack.c.0.s8 %v2581
    %v2583 = vperm.slane %v2578, %v2582
    %2585 = vset.pattern.permute.xlu0 0
    %2586 = vperm.xlu0 %2585, %v2528
    %v2587 = vpop.permute.xlu0 %2586
    %v2590 = vunpack.c.l.s4 839922192
    %v2591 = vunpack.c.0.s8 %v2590
    %v2592 = vperm.slane %v2587, %v2591
    %2594 = vset.pattern.permute.xlu0 0
    %2595 = vperm.xlu0 %2594, %v2529
    %v2596 = vpop.permute.xlu0 %2595
    %v2599 = vunpack.c.l.s4 839922192
    %v2600 = vunpack.c.0.s8 %v2599
    %v2601 = vperm.slane %v2596, %v2600
    %2603 = vset.pattern.permute.xlu0 0
    %2604 = vperm.xlu0 %2603, %v2530
    %v2605 = vpop.permute.xlu0 %2604
    %v2608 = vunpack.c.l.s4 839922192
    %v2609 = vunpack.c.0.s8 %v2608
    %v2610 = vperm.slane %v2605, %v2609
    %2612 = vset.pattern.permute.xlu0 0
    %2613 = vperm.xlu0 %2612, %v2531
    %v2614 = vpop.permute.xlu0 %2613
    %v2617 = vunpack.c.l.s4 839922192
    %v2618 = vunpack.c.0.s8 %v2617
    %v2619 = vperm.slane %v2614, %v2618
    %2621 = vset.pattern.permute.xlu0 0
    %2622 = vperm.xlu0 %2621, %v2532
    %v2623 = vpop.permute.xlu0 %2622
    %v2626 = vunpack.c.l.s4 839922192
    %v2627 = vunpack.c.0.s8 %v2626
    %v2628 = vperm.slane %v2623, %v2627
    %2630 = vset.pattern.permute.xlu0 0
    %2631 = vperm.xlu0 %2630, %v2533
    %v2632 = vpop.permute.xlu0 %2631
    %v2635 = vunpack.c.l.s4 839922192
    %v2636 = vunpack.c.0.s8 %v2635
    %v2637 = vperm.slane %v2632, %v2636
    %2639 = vset.pattern.permute.xlu0 0
    %2640 = vperm.xlu0 %2639, %v2534
    %v2641 = vpop.permute.xlu0 %2640
    %v2644 = vunpack.c.l.s4 839922192
    %v2645 = vunpack.c.0.s8 %v2644
    %v2646 = vperm.slane %v2641, %v2645
    %2648 = vset.pattern.permute.xlu0 0
    %2649 = vperm.xlu0 %2648, %v2535
    %v2650 = vpop.permute.xlu0 %2649
    %v2653 = vunpack.c.l.s4 839922192
    %v2654 = vunpack.c.0.s8 %v2653
    %v2655 = vperm.slane %v2650, %v2654
    %2657 = vset.pattern.permute.xlu0 0
    %2658 = vperm.xlu0 %2657, %v2536
    %v2659 = vpop.permute.xlu0 %2658
    %v2662 = vunpack.c.l.s4 839922192
    %v2663 = vunpack.c.0.s8 %v2662
    %v2664 = vperm.slane %v2659, %v2663
    %2666 = vset.pattern.permute.xlu0 0
    %2667 = vperm.xlu0 %2666, %v2537
    %v2668 = vpop.permute.xlu0 %2667
    %v2671 = vunpack.c.l.s4 839922192
    %v2672 = vunpack.c.0.s8 %v2671
    %v2673 = vperm.slane %v2668, %v2672
    %2675 = vset.pattern.permute.xlu0 0
    %2676 = vperm.xlu0 %2675, %v2538
    %v2677 = vpop.permute.xlu0 %2676
    %v2680 = vunpack.c.l.s4 839922192
    %v2681 = vunpack.c.0.s8 %v2680
    %v2682 = vperm.slane %v2677, %v2681
    %2684 = vset.pattern.permute.xlu0 0
    %2685 = vperm.xlu0 %2684, %v2539
    %v2686 = vpop.permute.xlu0 %2685
    %v2689 = vunpack.c.l.s4 839922192
    %v2690 = vunpack.c.0.s8 %v2689
    %v2691 = vperm.slane %v2686, %v2690
    %2693 = vset.pattern.permute.xlu0 0
    %2694 = vperm.xlu0 %2693, %v2540
    %v2695 = vpop.permute.xlu0 %2694
    %v2698 = vunpack.c.l.s4 839922192
    %v2699 = vunpack.c.0.s8 %v2698
    %v2700 = vperm.slane %v2695, %v2699
    %2702 = vset.pattern.permute.xlu0 0
    %2703 = vperm.xlu0 %2702, %v2541
    %v2704 = vpop.permute.xlu0 %2703
    %v2707 = vunpack.c.l.s4 839922192
    %v2708 = vunpack.c.0.s8 %v2707
    %v2709 = vperm.slane %v2704, %v2708
    %2711 = vset.pattern.permute.xlu0 0
    %2712 = vperm.xlu0 %2711, %v2542
    %v2713 = vpop.permute.xlu0 %2712
    %v2716 = vunpack.c.l.s4 839922192
    %v2717 = vunpack.c.0.s8 %v2716
    %v2718 = vperm.slane %v2713, %v2717
    %2720 = vset.pattern.permute.xlu0 0
    %2721 = vperm.xlu0 %2720, %v2543
    %v2722 = vpop.permute.xlu0 %2721
    %v2725 = vunpack.c.l.s4 839922192
    %v2726 = vunpack.c.0.s8 %v2725
    %v2727 = vperm.slane %v2722, %v2726
    %2729 = vset.pattern.permute.xlu0 0
    %2730 = vperm.xlu0 %2729, %v2544
    %v2731 = vpop.permute.xlu0 %2730
    %v2734 = vunpack.c.l.s4 839922192
    %v2735 = vunpack.c.0.s8 %v2734
    %v2736 = vperm.slane %v2731, %v2735
    %2738 = vset.pattern.permute.xlu0 0
    %2739 = vperm.xlu0 %2738, %v2545
    %v2740 = vpop.permute.xlu0 %2739
    %v2743 = vunpack.c.l.s4 839922192
    %v2744 = vunpack.c.0.s8 %v2743
    %v2745 = vperm.slane %v2740, %v2744
    %2747 = vset.pattern.permute.xlu0 0
    %2748 = vperm.xlu0 %2747, %v2546
    %v2749 = vpop.permute.xlu0 %2748
    %v2752 = vunpack.c.l.s4 839922192
    %v2753 = vunpack.c.0.s8 %v2752
    %v2754 = vperm.slane %v2749, %v2753
    %2756 = vset.pattern.permute.xlu0 0
    %2757 = vperm.xlu0 %2756, %v2547
    %v2758 = vpop.permute.xlu0 %2757
    %v2761 = vunpack.c.l.s4 839922192
    %v2762 = vunpack.c.0.s8 %v2761
    %v2763 = vperm.slane %v2758, %v2762
    %2765 = vset.pattern.permute.xlu0 0
    %2766 = vperm.xlu0 %2765, %v2548
    %v2767 = vpop.permute.xlu0 %2766
    %v2770 = vunpack.c.l.s4 839922192
    %v2771 = vunpack.c.0.s8 %v2770
    %v2772 = vperm.slane %v2767, %v2771
    %2774 = vset.pattern.permute.xlu0 0
    %2775 = vperm.xlu0 %2774, %v2549
    %v2776 = vpop.permute.xlu0 %2775
    %v2779 = vunpack.c.l.s4 839922192
    %v2780 = vunpack.c.0.s8 %v2779
    %v2781 = vperm.slane %v2776, %v2780
    %2783 = vset.pattern.permute.xlu0 0
    %2784 = vperm.xlu0 %2783, %v2550
    %v2785 = vpop.permute.xlu0 %2784
    %v2788 = vunpack.c.l.s4 839922192
    %v2789 = vunpack.c.0.s8 %v2788
    %v2790 = vperm.slane %v2785, %v2789
    %2792 = vset.pattern.permute.xlu0 0
    %2793 = vperm.xlu0 %2792, %v2551
    %v2794 = vpop.permute.xlu0 %2793
    %v2797 = vunpack.c.l.s4 839922192
    %v2798 = vunpack.c.0.s8 %v2797
    %v2799 = vperm.slane %v2794, %v2798
    %2801 = vset.pattern.permute.xlu0 0
    %2802 = vperm.xlu0 %2801, %v2552
    %v2803 = vpop.permute.xlu0 %2802
    %v2806 = vunpack.c.l.s4 839922192
    %v2807 = vunpack.c.0.s8 %v2806
    %v2808 = vperm.slane %v2803, %v2807
    %2810 = vset.pattern.permute.xlu0 0
    %2811 = vperm.xlu0 %2810, %v2553
    %v2812 = vpop.permute.xlu0 %2811
    %v2815 = vunpack.c.l.s4 839922192
    %v2816 = vunpack.c.0.s8 %v2815
    %v2817 = vperm.slane %v2812, %v2816
    %2819 = vset.pattern.permute.xlu0 0
    %2820 = vperm.xlu0 %2819, %v2554
    %v2821 = vpop.permute.xlu0 %2820
    %v2824 = vunpack.c.l.s4 839922192
    %v2825 = vunpack.c.0.s8 %v2824
    %v2826 = vperm.slane %v2821, %v2825
    %2828 = vset.pattern.permute.xlu0 0
    %2829 = vperm.xlu0 %2828, %v2555
    %v2830 = vpop.permute.xlu0 %2829
    %v2833 = vunpack.c.l.s4 839922192
    %v2834 = vunpack.c.0.s8 %v2833
    %v2835 = vperm.slane %v2830, %v2834
    %2837 = vset.pattern.permute.xlu0 0
    %2838 = vperm.xlu0 %2837, %v2556
    %v2839 = vpop.permute.xlu0 %2838
    %v2842 = vunpack.c.l.s4 839922192
    %v2843 = vunpack.c.0.s8 %v2842
    %v2844 = vperm.slane %v2839, %v2843
    %v2845 = vunpack.c.l.bf16 %v2461
    %v2846 = vunpack.c.l.bf16 %v2462
    %v2847 = vunpack.c.l.bf16 %v2463
    %v2848 = vunpack.c.l.bf16 %v2464
    %v2849 = vunpack.c.l.bf16 %v2465
    %v2850 = vunpack.c.l.bf16 %v2466
    %v2851 = vunpack.c.l.bf16 %v2467
    %v2852 = vunpack.c.l.bf16 %v2468
    %v2853 = vunpack.c.l.bf16 %v2469
    %v2854 = vunpack.c.l.bf16 %v2470
    %v2855 = vunpack.c.l.bf16 %v2471
    %v2856 = vunpack.c.l.bf16 %v2472
    %v2857 = vunpack.c.l.bf16 %v2473
    %v2858 = vunpack.c.l.bf16 %v2474
    %v2859 = vunpack.c.l.bf16 %v2475
    %v2860 = vunpack.c.l.bf16 %v2476
    %v2861 = vunpack.c.l.bf16 %v2477
    %v2862 = vunpack.c.l.bf16 %v2478
    %v2863 = vunpack.c.l.bf16 %v2479
    %v2864 = vunpack.c.l.bf16 %v2480
    %v2865 = vunpack.c.l.bf16 %v2481
    %v2866 = vunpack.c.l.bf16 %v2482
    %v2867 = vunpack.c.l.bf16 %v2483
    %v2868 = vunpack.c.l.bf16 %v2484
    %v2869 = vunpack.c.l.bf16 %v2485
    %v2870 = vunpack.c.l.bf16 %v2486
    %v2871 = vunpack.c.l.bf16 %v2487
    %v2872 = vunpack.c.l.bf16 %v2488
    %v2873 = vunpack.c.l.bf16 %v2489
    %v2874 = vunpack.c.l.bf16 %v2490
    %v2875 = vunpack.c.l.bf16 %v2491
    %v2876 = vunpack.c.l.bf16 %v2492
    %v2877 = vunpack.c.l.bf16 %v2565
    %v2878 = vunpack.c.l.bf16 %v2574
    %v2879 = vunpack.c.l.bf16 %v2583
    %v2880 = vunpack.c.l.bf16 %v2592
    %v2881 = vunpack.c.l.bf16 %v2601
    %v2882 = vunpack.c.l.bf16 %v2610
    %v2883 = vunpack.c.l.bf16 %v2619
    %v2884 = vunpack.c.l.bf16 %v2628
    %v2885 = vunpack.c.l.bf16 %v2637
    %v2886 = vunpack.c.l.bf16 %v2646
    %v2887 = vunpack.c.l.bf16 %v2655
    %v2888 = vunpack.c.l.bf16 %v2664
    %v2889 = vunpack.c.l.bf16 %v2673
    %v2890 = vunpack.c.l.bf16 %v2682
    %v2891 = vunpack.c.l.bf16 %v2691
    %v2892 = vunpack.c.l.bf16 %v2700
    %v2893 = vunpack.c.l.bf16 %v2709
    %v2894 = vunpack.c.l.bf16 %v2718
    %v2895 = vunpack.c.l.bf16 %v2727
    %v2896 = vunpack.c.l.bf16 %v2736
    %v2897 = vunpack.c.l.bf16 %v2745
    %v2898 = vunpack.c.l.bf16 %v2754
    %v2899 = vunpack.c.l.bf16 %v2763
    %v2900 = vunpack.c.l.bf16 %v2772
    %v2901 = vunpack.c.l.bf16 %v2781
    %v2902 = vunpack.c.l.bf16 %v2790
    %v2903 = vunpack.c.l.bf16 %v2799
    %v2904 = vunpack.c.l.bf16 %v2808
    %v2905 = vunpack.c.l.bf16 %v2817
    %v2906 = vunpack.c.l.bf16 %v2826
    %v2907 = vunpack.c.l.bf16 %v2835
    %v2908 = vunpack.c.l.bf16 %v2844
    %v2909 = vadd.f32 %v2845, %v2877
    %v2910 = vadd.f32 %v2846, %v2878
    %v2911 = vadd.f32 %v2847, %v2879
    %v2912 = vadd.f32 %v2848, %v2880
    %v2913 = vadd.f32 %v2849, %v2881
    %v2914 = vadd.f32 %v2850, %v2882
    %v2915 = vadd.f32 %v2851, %v2883
    %v2916 = vadd.f32 %v2852, %v2884
    %v2917 = vadd.f32 %v2853, %v2885
    %v2918 = vadd.f32 %v2854, %v2886
    %v2919 = vadd.f32 %v2855, %v2887
    %v2920 = vadd.f32 %v2856, %v2888
    %v2921 = vadd.f32 %v2857, %v2889
    %v2922 = vadd.f32 %v2858, %v2890
    %v2923 = vadd.f32 %v2859, %v2891
    %v2924 = vadd.f32 %v2860, %v2892
    %v2925 = vadd.f32 %v2861, %v2893
    %v2926 = vadd.f32 %v2862, %v2894
    %v2927 = vadd.f32 %v2863, %v2895
    %v2928 = vadd.f32 %v2864, %v2896
    %v2929 = vadd.f32 %v2865, %v2897
    %v2930 = vadd.f32 %v2866, %v2898
    %v2931 = vadd.f32 %v2867, %v2899
    %v2932 = vadd.f32 %v2868, %v2900
    %v2933 = vadd.f32 %v2869, %v2901
    %v2934 = vadd.f32 %v2870, %v2902
    %v2935 = vadd.f32 %v2871, %v2903
    %v2936 = vadd.f32 %v2872, %v2904
    %v2937 = vadd.f32 %v2873, %v2905
    %v2938 = vadd.f32 %v2874, %v2906
    %v2939 = vadd.f32 %v2875, %v2907
    %v2940 = vadd.f32 %v2876, %v2908
    %v2941 = vpack.c.bf16 %v2909, %v2909
    %v2942 = vpack.c.bf16 %v2910, %v2910
    %v2943 = vpack.c.bf16 %v2911, %v2911
    %v2944 = vpack.c.bf16 %v2912, %v2912
    %v2945 = vpack.c.bf16 %v2913, %v2913
    %v2946 = vpack.c.bf16 %v2914, %v2914
    %v2947 = vpack.c.bf16 %v2915, %v2915
    %v2948 = vpack.c.bf16 %v2916, %v2916
    %v2949 = vpack.c.bf16 %v2917, %v2917
    %v2950 = vpack.c.bf16 %v2918, %v2918
    %v2951 = vpack.c.bf16 %v2919, %v2919
    %v2952 = vpack.c.bf16 %v2920, %v2920
    %v2953 = vpack.c.bf16 %v2921, %v2921
    %v2954 = vpack.c.bf16 %v2922, %v2922
    %v2955 = vpack.c.bf16 %v2923, %v2923
    %v2956 = vpack.c.bf16 %v2924, %v2924
    %v2957 = vpack.c.bf16 %v2925, %v2925
    %v2958 = vpack.c.bf16 %v2926, %v2926
    %v2959 = vpack.c.bf16 %v2927, %v2927
    %v2960 = vpack.c.bf16 %v2928, %v2928
    %v2961 = vpack.c.bf16 %v2929, %v2929
    %v2962 = vpack.c.bf16 %v2930, %v2930
    %v2963 = vpack.c.bf16 %v2931, %v2931
    %v2964 = vpack.c.bf16 %v2932, %v2932
    %v2965 = vpack.c.bf16 %v2933, %v2933
    %v2966 = vpack.c.bf16 %v2934, %v2934
    %v2967 = vpack.c.bf16 %v2935, %v2935
    %v2968 = vpack.c.bf16 %v2936, %v2936
    %v2969 = vpack.c.bf16 %v2937, %v2937
    %v2970 = vpack.c.bf16 %v2938, %v2938
    %v2971 = vpack.c.bf16 %v2939, %v2939
    %v2972 = vpack.c.bf16 %v2940, %v2940
    %v2973 = vunpack.c.l.bf16 %v2941
    %v2974 = vunpack.c.l.bf16 %v2942
    %v2975 = vunpack.c.l.bf16 %v2943
    %v2976 = vunpack.c.l.bf16 %v2944
    %v2977 = vunpack.c.l.bf16 %v2945
    %v2978 = vunpack.c.l.bf16 %v2946
    %v2979 = vunpack.c.l.bf16 %v2947
    %v2980 = vunpack.c.l.bf16 %v2948
    %v2981 = vunpack.c.l.bf16 %v2949
    %v2982 = vunpack.c.l.bf16 %v2950
    %v2983 = vunpack.c.l.bf16 %v2951
    %v2984 = vunpack.c.l.bf16 %v2952
    %v2985 = vunpack.c.l.bf16 %v2953
    %v2986 = vunpack.c.l.bf16 %v2954
    %v2987 = vunpack.c.l.bf16 %v2955
    %v2988 = vunpack.c.l.bf16 %v2956
    %v2989 = vunpack.c.l.bf16 %v2957
    %v2990 = vunpack.c.l.bf16 %v2958
    %v2991 = vunpack.c.l.bf16 %v2959
    %v2992 = vunpack.c.l.bf16 %v2960
    %v2993 = vunpack.c.l.bf16 %v2961
    %v2994 = vunpack.c.l.bf16 %v2962
    %v2995 = vunpack.c.l.bf16 %v2963
    %v2996 = vunpack.c.l.bf16 %v2964
    %v2997 = vunpack.c.l.bf16 %v2965
    %v2998 = vunpack.c.l.bf16 %v2966
    %v2999 = vunpack.c.l.bf16 %v2967
    %v3000 = vunpack.c.l.bf16 %v2968
    %v3001 = vunpack.c.l.bf16 %v2969
    %v3002 = vunpack.c.l.bf16 %v2970
    %v3003 = vunpack.c.l.bf16 %v2971
    %v3004 = vunpack.c.l.bf16 %v2972
    %v3005 = vmax.f32 %v2973, 0.0
    %v3006 = vmax.f32 %v2974, 0.0
    %v3007 = vmax.f32 %v2975, 0.0
    %v3008 = vmax.f32 %v2976, 0.0
    %v3009 = vmax.f32 %v2977, 0.0
    %v3010 = vmax.f32 %v2978, 0.0
    %v3011 = vmax.f32 %v2979, 0.0
    %v3012 = vmax.f32 %v2980, 0.0
    %v3013 = vmax.f32 %v2981, 0.0
    %v3014 = vmax.f32 %v2982, 0.0
    %v3015 = vmax.f32 %v2983, 0.0
    %v3016 = vmax.f32 %v2984, 0.0
    %v3017 = vmax.f32 %v2985, 0.0
    %v3018 = vmax.f32 %v2986, 0.0
    %v3019 = vmax.f32 %v2987, 0.0
    %v3020 = vmax.f32 %v2988, 0.0
    %v3021 = vmax.f32 %v2989, 0.0
    %v3022 = vmax.f32 %v2990, 0.0
    %v3023 = vmax.f32 %v2991, 0.0
    %v3024 = vmax.f32 %v2992, 0.0
    %v3025 = vmax.f32 %v2993, 0.0
    %v3026 = vmax.f32 %v2994, 0.0
    %v3027 = vmax.f32 %v2995, 0.0
    %v3028 = vmax.f32 %v2996, 0.0
    %v3029 = vmax.f32 %v2997, 0.0
    %v3030 = vmax.f32 %v2998, 0.0
    %v3031 = vmax.f32 %v2999, 0.0
    %v3032 = vmax.f32 %v3000, 0.0
    %v3033 = vmax.f32 %v3001, 0.0
    %v3034 = vmax.f32 %v3002, 0.0
    %v3035 = vmax.f32 %v3003, 0.0
    %v3036 = vmax.f32 %v3004, 0.0
    %v3037 = vpack.c.bf16 %v3006, %v3005
    %v3038 = vpack.c.bf16 %v3008, %v3007
    %v3039 = vpack.c.bf16 %v3010, %v3009
    %v3040 = vpack.c.bf16 %v3012, %v3011
    %v3041 = vpack.c.bf16 %v3014, %v3013
    %v3042 = vpack.c.bf16 %v3016, %v3015
    %v3043 = vpack.c.bf16 %v3018, %v3017
    %v3044 = vpack.c.bf16 %v3020, %v3019
    %v3045 = vpack.c.bf16 %v3022, %v3021
    %v3046 = vpack.c.bf16 %v3024, %v3023
    %v3047 = vpack.c.bf16 %v3026, %v3025
    %v3048 = vpack.c.bf16 %v3028, %v3027
    %v3049 = vpack.c.bf16 %v3030, %v3029
    %v3050 = vpack.c.bf16 %v3032, %v3031
    %v3051 = vpack.c.bf16 %v3034, %v3033
    %v3052 = vpack.c.bf16 %v3036, %v3035
    %v3053 = vld [vmem:[%s5] sm:$0xf]
    %v3054 = vld [vmem:[%s6] sm:$0xf]
    %3056 = vset.pattern.permute.xlu0 0
    %3057 = vperm.xlu0 %3056, %v3054
    %v3058 = vpop.permute.xlu0 %3057
    %3061 = vst [vmem:[#allocation1] ss:$4 sm:$0xff] %v3053
    %v3062 = vld.sshfl [vmem:[#allocation1] sm:$0xff pattern:$0x73625140]
    %v3063 = vld.sshfl [vmem:[#allocation1 + $0x8] sm:$0xff pattern:$0x73625140]
    %3066 = vmatpush.bf16.msra.mxu0 %v3044
    %3067 = vmatpush.bf16.msra.mxu0 %v3043
    %3068 = vmatpush.bf16.msra.mxu0 %v3042
    %3069 = vmatpush.bf16.msra.mxu0 %v3041
    %3070 = vmatpush.bf16.msra.mxu0 %v3040
    %3071 = vmatpush.bf16.msra.mxu0 %v3039
    %3072 = vmatpush.bf16.msra.mxu0 %v3038
    %3073 = vmatpush.bf16.msra.mxu0 %v3037
    %3074 = vmatmul.bf16.gmra.mxu0 %v3062
    %v3075 = vpop.f32.mrf.mxu0
    %v3076 = vadd.f32 %v3058, %v3075
    %v3077 = vpop.f32.mrf.mxu0
    %3078 = vdwg.mxu0
    %3079 = vmatpush.bf16.msra.mxu0 %v3052
    %3080 = vmatpush.bf16.msra.mxu0 %v3051
    %3081 = vmatpush.bf16.msra.mxu0 %v3050
    %3082 = vmatpush.bf16.msra.mxu0 %v3049
    %3083 = vmatpush.bf16.msra.mxu0 %v3048
    %3084 = vmatpush.bf16.msra.mxu0 %v3047
    %3085 = vmatpush.bf16.msra.mxu0 %v3046
    %3086 = vmatpush.bf16.msra.mxu0 %v3045
    %3087 = vmatmul.bf16.gmra.mxu0 %v3063
    %v3088 = vpop.f32.mrf.mxu0
    %v3089 = vadd.f32 %v3076, %v3088
    %v3090 = vpop.f32.mrf.mxu0
    %3091 = vdwg.mxu0
    %v3092 = vtanh.pop %v3089
    %v3093 = vld [vmem:[%s6] sm:$0xf]
    %v3094 = vld [vmem:[%s7] sm:$0xf]
    %3096 = vset.pattern.permute.xlu0 1
    %3097 = vperm.xlu0 %3096, %v3093
    %v3098 = vpop.permute.xlu0 %3097
    %v3100 = vmul.f32 %v3098, %v3094
    %v3101 = vadd.f32 %v3092, %v3100
    %v3102 = vmax.f32 %v3101, -1.0
    %v3103 = vmin.f32 %v3102, 1.0
    %v3104 = vsub.f32 %v3103, %v3092
    %v3105 = vmul.f32 %v3104, %v3104
    %3106 = vset.pattern.permute.xlu0 2
    %3107 = vperm.xlu0 %3106, %v3093
    %v3108 = vpop.permute.xlu0 %3107
    %v3110 = vmul.f32 %v3105, %v3108
    %vm3111 = vcmask 60416
    %v3112 = vsel %vm3111, %v3110, 0.0
    %v3113 = vrot.slane %v3112, 4
    %v3114 = vadd.f32 %v3112, %v3113
    %v3115 = vrot.slane %v3114, 2
    %v3116 = vadd.f32 %v3114, %v3115
    %v3117 = vrot.slane %v3116, 1
    %v3118 = vadd.f32 %v3116, %v3117
    %v3119 = vsub.f32 0.0, %v3118
    %v3120 = vld [vmem:[%s6] sm:$0x1]
    %3122 = vset.pattern.permute.xlu0 3
    %3123 = vperm.xlu0 %3122, %v3120
    %v3124 = vpop.permute.xlu0 %3123
    %v3126 = vadd.f32 %v3119, %v3124
    %3127 = vst.msk [vmem:[#allocation2] sm:$0xf] %vm3111, %v3103
    %vm3128 = vcmask 57344
    %3129 = vst.msk [vmem:[#allocation2 + $0x4] sm:$0x1] %vm3128, %v3126
    // Predicated region
    $region34: #{tpu_custom_call.1} parent=1 // pred_check
      _
    $region35: #{tpu_custom_call.1} parent=1 // pred_check_branch
      %3131 = sbr.rel (0) target = $region37
    $region36: #{tpu_custom_call.1} parent=1 // pred_region
      %3133 = vsyncadd [#allocation3], 0
      %s3135 = sshll.u32 [#allocation2], 4
      %s3136 = int_to_ptr.vmem [resolvable:$true] %s3135
      %s3137 = sshll.u32 %s8, 4
      %s3138 = int_to_ptr.hbm [resolvable:$true] %s3137
      %3140 = dma.vmem_to_hbm [thread:$0]  %s3136, 128, %s3138, [#allocation3]
    $region37: #{tpu_custom_call.1} parent=1 // pred_fallthru
      _
    // Predicated region
    $region38: #{tpu_custom_call.1} parent=1 // pred_check
      _
    $region39: #{tpu_custom_call.1} parent=1 // pred_check_branch
      %3142 = sbr.rel (0) target = $region41
    $region40: #{tpu_custom_call.1} parent=1 // pred_region
      %3144 = dma.done [#allocation3], 128
    $region41: #{tpu_custom_call.1} parent=1 // pred_fallthru
      _
    %3145 = vsyncpa [#allocation3], 1

</llo_original>
